<compile_context>
chip_gen: v7x
topology: tpu7x:2x2x1
jax: 0.10.0
libtpu: 0.0.40
codegen_flags: <defaults>
</compile_context>

<pallas_src>
import functools

import jax
import jax.numpy as jnp
from jax.experimental import pallas as pl
from jax.experimental.pallas import tpu as pltpu


def _round_up(x, m):
    return (x + m - 1) // m * m


def _vmem_limit_bytes():
    """Generation-aware scoped-VMEM limit (v5e/v6e: 128 MiB phys, v7x: 64 MiB)."""
    phys = 64 * 1024 * 1024                      # conservative fallback (v7x)
    try:
        info = pltpu.get_tpu_info()
        phys = int(getattr(info, "vmem_capacity_bytes", phys)) or phys
    except Exception:
        pass
    return max(32 * 1024 * 1024, min(3 * phys // 4, 112 * 1024 * 1024))


def _pick_rows_pass1(oh, wp, cin, cout, n_taps, hpwp_pad, budget):
    """Largest output-row tile whose full pass-1 working set fits `budget`.

    A row tile of `toh` rows maps to a lane block L = toh*Wp, which must be a
    multiple of 128 unless toh == OH (full block, always legal)."""
    def cost(toh):
        l = toh * wp
        return (2 * cin * hpwp_pad * 2          # padded image (bf16), dbl-buffered
                + 2 * n_taps * cout * cin * 2   # weights (bf16), dbl-buffered
                + 2 * cout * l * 2              # conv tile out (bf16), dbl-buffered
                + 2 * cout * l * 4              # f32 accumulator (+ headroom)
                + 2 * l * 4                     # validity mask
                + 4 * cout * 4 * 2)             # partial-stat outputs
    if cost(oh) <= budget:
        return oh
    cands = [t for t in range(oh - 1, 0, -1)
             if oh % t == 0 and (t * wp) % 128 == 0]
    for t in cands:
        if cost(t) <= budget:
            return t
    return cands[-1] if cands else oh


def _pick_rows_pass2(oh, wp, ow, cout, budget):
    """Row tile for the memory-bound BN/ReLU pass (independent of pass 1)."""
    def cost(t):
        return 2 * cout * t * wp * 2 + 2 * cout * t * ow * 4 + 4 * cout * 4
    if cost(oh) <= budget:
        return oh
    cands = [t for t in range(oh - 1, 0, -1) if oh % t == 0 and t % 8 == 0]
    for t in cands:
        if cost(t) <= budget:
            return t
    return cands[-1] if cands else oh


# ---------------------------------------------------------------------------
# Pass 1: fused im2col conv (implicit GEMM, MXU) + per-tile partial BN stats.
# No cross-grid-step state -> both grid axes are megacore-parallel.
# ---------------------------------------------------------------------------
def _conv_stats_kernel(x_ref, w_ref, mask_ref,                  # inputs
                       conv_ref, psum_ref, psumsq_ref,          # outputs
                       *, n_kh, n_kw, w_pad, dilation, tile_rows, multi_tile):
    l = tile_rows * w_pad
    if multi_tile:
        base = pl.multiple_of(pl.program_id(1) * l, 128)        # l % 128 == 0 here
    else:
        base = 0                                                # fully static slices

    acc = None
    for kh in range(n_kh):
        for kw in range(n_kw):
            # Tap (kh,kw) of every output position in this row tile is one
            # contiguous window of the row-flattened padded image.
            off = base + (kh * w_pad + kw) * dilation
            xt = x_ref[0, :, pl.ds(off, l)]                     # (Cin, L) bf16
            wt = w_ref[kh * n_kw + kw]                          # (Cout, Cin) bf16
            # NOTE: the Conv2d bias is intentionally omitted -- training-mode
            # BN subtracts the per-channel batch mean, which cancels any
            # per-channel constant exactly (it is re-added only implicitly).
            part = jnp.dot(wt, xt, preferred_element_type=jnp.float32)
            acc = part if acc is None else acc + part           # (Cout, L) f32

    conv_ref[0] = acc.astype(conv_ref.dtype)                    # bf16 intermediate

    # Partial statistics over *valid* output columns only: lanes whose column
    # index is >= OW hold padded-coordinate garbage and are masked out.
    valid = acc * mask_ref[...]                                 # (Cout, L)
    psum_ref[0, 0] = jnp.sum(valid, axis=1, keepdims=True)      # (Cout, 1)
    psumsq_ref[0, 0] = jnp.sum(acc * valid, axis=1, keepdims=True)


# ---------------------------------------------------------------------------
# Pass 2: y = relu(conv * scale + shift), dropping the padded columns.
# ---------------------------------------------------------------------------
def _bn_relu_kernel(conv_ref, scale_ref, shift_ref, out_ref, *, ow):
    x = conv_ref[0, :, :, :ow].astype(jnp.float32)              # (Cout, T, OW)
    out_ref[0] = jnp.maximum(x * scale_ref[...] + shift_ref[...], 0.0
                             ).astype(out_ref.dtype)


def conv2d_batchnorm_relu(x_nchw, weight, bias, gamma, beta, *,
                          stride=1, padding=1, dilation=1, eps=1e-5,
                          compute_dtype=jnp.bfloat16):
    """Forward of conv2DBatchNormRelu (is_batchnorm=True path).

    x_nchw : (N, Cin, H, W) float32
    weight : (Cout, Cin, KH, KW)  (PyTorch Conv2d layout)
    bias   : (Cout,)  accepted for API fidelity; exactly cancelled by the
                      training-mode BatchNorm mean subtraction, hence unused.
    gamma, beta : (Cout,)  BatchNorm2d affine parameters.
    Returns (N, Cout, OH, OW) float32.
    """
    del bias  # cancelled by the BN batch-mean subtraction (see kernel comment)
    # TODO(synk): stride > 1 fused path not implemented (SegNet's
    # conv2DBatchNormRelu always uses stride=1).
    assert stride == 1, "fused Pallas path supports stride=1 only"

    N, Cin, H, W = x_nchw.shape
    Cout, _, KH, KW = weight.shape
    Hp, Wp = H + 2 * padding, W + 2 * padding
    OH = Hp - dilation * (KH - 1)
    OW = Wp - dilation * (KW - 1)
    n_taps = KH * KW

    # ---- glue (all ~1x traffic): cast to bf16, pad, row-flatten -------------
    xq = x_nchw.astype(compute_dtype)
    xp = jnp.pad(xq, ((0, 0), (0, 0), (padding, padding), (padding, padding)))
    hpwp = Hp * Wp
    hpwp_pad = _round_up(hpwp + (KW - 1) * dilation, 128)   # tap-slice overrun room
    x_flat = jnp.pad(xp.reshape(N, Cin, hpwp),
                     ((0, 0), (0, 0), (0, hpwp_pad - hpwp)))

    # Weights as (KH*KW, Cout, Cin), tap-major, matching the in-kernel loop.
    w_taps = jnp.transpose(weight, (2, 3, 0, 1)).reshape(n_taps, Cout, Cin)
    w_taps = w_taps.astype(compute_dtype)

    vmem_limit = _vmem_limit_bytes()
    budget = (6 * vmem_limit) // 10

    # ---- pass 1: fused conv (padded-coordinate columns) + partial stats -----
    toh1 = _pick_rows_pass1(OH, Wp, Cin, Cout, n_taps, hpwp_pad, budget)
    mt = OH // toh1
    L = toh1 * Wp
    col = jnp.arange(L, dtype=jnp.int32) % Wp
    mask = (col < OW).astype(jnp.float32).reshape(1, L)     # valid-column mask

    conv_flat, psum, psumsq = pl.pallas_call(
        functools.partial(_conv_stats_kernel, n_kh=KH, n_kw=KW, w_pad=Wp,
                          dilation=dilation, tile_rows=toh1, multi_tile=mt > 1),
        grid=(N, mt),
        in_specs=[
            # whole padded image per n; re-used (not re-fetched) across mt
            pl.BlockSpec((1, Cin, hpwp_pad), lambda n, m: (n, 0, 0)),
            pl.BlockSpec((n_taps, Cout, Cin), lambda n, m: (0, 0, 0)),
            pl.BlockSpec((1, L), lambda n, m: (0, 0)),
        ],
        out_specs=(
            pl.BlockSpec((1, Cout, L), lambda n, m: (n, 0, m)),
            pl.BlockSpec((1, 1, Cout, 1), lambda n, m: (n, m, 0, 0)),
            pl.BlockSpec((1, 1, Cout, 1), lambda n, m: (n, m, 0, 0)),
        ),
        out_shape=(
            jax.ShapeDtypeStruct((N, Cout, OH * Wp), compute_dtype),
            jax.ShapeDtypeStruct((N, mt, Cout, 1), jnp.float32),
            jax.ShapeDtypeStruct((N, mt, Cout, 1), jnp.float32),
        ),
        compiler_params=pltpu.CompilerParams(
            dimension_semantics=("parallel", "parallel"),
            vmem_limit_bytes=vmem_limit),
        cost_estimate=pl.CostEstimate(
            flops=2 * N * Cout * Cin * n_taps * OH * Wp,
            transcendentals=0,
            bytes_accessed=(N * Cin * hpwp_pad + n_taps * Cout * Cin
                            + N * Cout * OH * Wp) * 2),
    )(x_flat, w_taps, mask)

    # ---- BN finalize (Cout-sized, negligible): folded scale / shift ---------
    count = float(N * OH * OW)
    s = jnp.sum(psum, axis=(0, 1))                           # (Cout, 1) f32
    ss = jnp.sum(psumsq, axis=(0, 1))
    mean = s / count
    var = jnp.maximum(ss / count - mean * mean, 0.0)
    scale = gamma.reshape(Cout, 1).astype(jnp.float32) * jax.lax.rsqrt(var + eps)
    shift = beta.reshape(Cout, 1).astype(jnp.float32) - mean * scale
    scale = scale.reshape(Cout, 1, 1)
    shift = shift.reshape(Cout, 1, 1)

    # ---- pass 2: relu(conv*scale + shift) on valid columns only -------------
    conv4 = conv_flat.reshape(N, Cout, OH, Wp)               # split of minor dim
    toh2 = _pick_rows_pass2(OH, Wp, OW, Cout, budget)
    out = pl.pallas_call(
        functools.partial(_bn_relu_kernel, ow=OW),
        grid=(N, OH // toh2),
        in_specs=[
            pl.BlockSpec((1, Cout, toh2, Wp), lambda n, m: (n, 0, m, 0)),
            pl.BlockSpec((Cout, 1, 1), lambda n, m: (0, 0, 0)),
            pl.BlockSpec((Cout, 1, 1), lambda n, m: (0, 0, 0)),
        ],
        out_specs=pl.BlockSpec((1, Cout, toh2, OW), lambda n, m: (n, 0, m, 0)),
        out_shape=jax.ShapeDtypeStruct((N, Cout, OH, OW), jnp.float32),
        compiler_params=pltpu.CompilerParams(
            dimension_semantics=("parallel", "parallel"),
            vmem_limit_bytes=vmem_limit),
        cost_estimate=pl.CostEstimate(
            flops=2 * N * Cout * OH * OW,
            transcendentals=0,
            bytes_accessed=N * Cout * OH * (Wp * 2 + OW * 4)),
    )(conv4, scale, shift)

    return out


if __name__ == "__main__":
    # Module config: conv2DBatchNormRelu(in_channels=4, n_filters=8, k_size=3,
    #                                    stride=1, padding=1, bias=True,
    #                                    dilation=1, is_batchnorm=True)
    N, Cin, H, W = 2, 4, 16, 16
    Cout, KH, KW = 8, 3, 3
    stride = padding = dilation = 1
    eps = 1e-5

    key = jax.random.PRNGKey(0)
    kx, kwt, kb = jax.random.split(key, 3)
    x = jax.random.normal(kx, (N, Cin, H, W), dtype=jnp.float32)

    fan_in = Cin * KH * KW
    bound = 1.0 / (fan_in ** 0.5)
    weight = jax.random.uniform(kwt, (Cout, Cin, KH, KW), jnp.float32,
                                -bound, bound)
    bias = jax.random.uniform(kb, (Cout,), jnp.float32, -bound, bound)
    gamma = jnp.ones((Cout,), jnp.float32)   # BatchNorm2d default init
    beta = jnp.zeros((Cout,), jnp.float32)

    fwd = jax.jit(functools.partial(conv2d_batchnorm_relu, stride=stride,
                                    padding=padding, dilation=dilation,
                                    eps=eps))
    out = jax.block_until_ready(fwd(x, weight, bias, gamma, beta))

    assert out.shape == (N, Cout, H, W)
    assert bool(jnp.all(out >= 0.0))

    # Reference: XLA conv + training-mode BN + ReLU, using the same bf16
    # operand rounding as the kernel's MXU pass (f32 math everywhere else).
    xq = x.astype(jnp.bfloat16).astype(jnp.float32)
    wq = weight.astype(jnp.bfloat16).astype(jnp.float32)
    conv_ref = jax.lax.conv_general_dilated(
        xq, wq, window_strides=(stride, stride),
        padding=((padding, padding), (padding, padding)),
        rhs_dilation=(dilation, dilation),
        dimension_numbers=("NCHW", "OIHW", "NCHW"),
        precision=jax.lax.Precision.HIGHEST)
    conv_ref = conv_ref + bias[None, :, None, None]   # cancelled by BN below
    mu = jnp.mean(conv_ref, axis=(0, 2, 3), keepdims=True)
    var = jnp.mean((conv_ref - mu) ** 2, axis=(0, 2, 3), keepdims=True)
    ref = jnp.maximum(
        (conv_ref - mu) * jax.lax.rsqrt(var + eps)
        * gamma[None, :, None, None] + beta[None, :, None, None], 0.0)

    max_err = float(jnp.max(jnp.abs(out - ref)))
    assert max_err < 3e-2, f"max abs error too large: {max_err}"

    print("KERNEL_OK")
</pallas_src>

<mosaic_0001>
module attributes {stable_mosaic.version = 11 : i64} {
  func.func @_conv_stats_kernel(%arg0: i32, %arg1: i32, %arg2: memref<1x4x384xbf16, #tpu.memory_space<vmem>>, %arg3: memref<9x8x4xbf16, #tpu.memory_space<vmem>>, %arg4: memref<1x288xf32, #tpu.memory_space<vmem>>, %arg5: memref<1x8x288xbf16, #tpu.memory_space<vmem>>, %arg6: memref<1x1x8x1xf32, #tpu.memory_space<vmem>>, %arg7: memref<1x1x8x1xf32, #tpu.memory_space<vmem>>) attributes {dimension_semantics = [#tpu.dimension_semantics<parallel>, #tpu.dimension_semantics<parallel>], iteration_bounds = array<i64: 2, 1>, scalar_prefetch = 0 : i64, scratch_operands = 0 : i64, tpu.core_type = #tpu.core_type<tc>, window_params = [{transform_indices = @transform_0, window_bounds = array<i64: 1, 4, 384>}, {pipeline_mode = #tpu.pipeline_mode<synchronous>, transform_indices = @transform_1, window_bounds = array<i64: 9, 8, 4>}, {pipeline_mode = #tpu.pipeline_mode<synchronous>, transform_indices = @transform_2, window_bounds = array<i64: 1, 288>}, {transform_indices = @transform_3, window_bounds = array<i64: 1, 8, 288>}, {transform_indices = @transform_4, window_bounds = array<i64: 1, 1, 8, 1>}, {transform_indices = @transform_5, window_bounds = array<i64: 1, 1, 8, 1>}]} {
    %c0 = arith.constant 0 : index
    %c0_0 = arith.constant 0 : index
    %c0_1 = arith.constant 0 : index
    %0 = vector.load %arg2[%c0, %c0_0, %c0_1] : memref<1x4x384xbf16, #tpu.memory_space<vmem>>, vector<1x4x288xbf16>
    %1 = vector.shape_cast %0 : vector<1x4x288xbf16> to vector<4x288xbf16>
    %c0_2 = arith.constant 0 : index
    %c0_3 = arith.constant 0 : index
    %c0_4 = arith.constant 0 : index
    %2 = vector.load %arg3[%c0_2, %c0_3, %c0_4] : memref<9x8x4xbf16, #tpu.memory_space<vmem>>, vector<1x8x4xbf16>
    %3 = vector.shape_cast %2 : vector<1x8x4xbf16> to vector<8x4xbf16>
    %cst = arith.constant dense<0.000000e+00> : vector<8x288xf32>
    %4 = tpu.matmul %3, %1, %cst {dimension_numbers = #tpu.dot_dimension_numbers<[1], [0], [0], [1], [0, 0, 1, 1], [], []>} : vector<8x4xbf16>, vector<4x288xbf16>, vector<8x288xf32> -> vector<8x288xf32>
    %c0_5 = arith.constant 0 : index
    %c0_6 = arith.constant 0 : index
    %c1 = arith.constant 1 : index
    %5 = vector.load %arg2[%c0_5, %c0_6, %c1] : memref<1x4x384xbf16, #tpu.memory_space<vmem>>, vector<1x4x288xbf16>
    %6 = vector.shape_cast %5 : vector<1x4x288xbf16> to vector<4x288xbf16>
    %c1_7 = arith.constant 1 : index
    %c0_8 = arith.constant 0 : index
    %c0_9 = arith.constant 0 : index
    %7 = vector.load %arg3[%c1_7, %c0_8, %c0_9] : memref<9x8x4xbf16, #tpu.memory_space<vmem>>, vector<1x8x4xbf16>
    %8 = vector.shape_cast %7 : vector<1x8x4xbf16> to vector<8x4xbf16>
    %cst_10 = arith.constant dense<0.000000e+00> : vector<8x288xf32>
    %9 = tpu.matmul %8, %6, %cst_10 {dimension_numbers = #tpu.dot_dimension_numbers<[1], [0], [0], [1], [0, 0, 1, 1], [], []>} : vector<8x4xbf16>, vector<4x288xbf16>, vector<8x288xf32> -> vector<8x288xf32>
    %10 = arith.addf %4, %9 : vector<8x288xf32>
    %c0_11 = arith.constant 0 : index
    %c0_12 = arith.constant 0 : index
    %c2 = arith.constant 2 : index
    %11 = vector.load %arg2[%c0_11, %c0_12, %c2] : memref<1x4x384xbf16, #tpu.memory_space<vmem>>, vector<1x4x288xbf16>
    %12 = vector.shape_cast %11 : vector<1x4x288xbf16> to vector<4x288xbf16>
    %c2_13 = arith.constant 2 : index
    %c0_14 = arith.constant 0 : index
    %c0_15 = arith.constant 0 : index
    %13 = vector.load %arg3[%c2_13, %c0_14, %c0_15] : memref<9x8x4xbf16, #tpu.memory_space<vmem>>, vector<1x8x4xbf16>
    %14 = vector.shape_cast %13 : vector<1x8x4xbf16> to vector<8x4xbf16>
    %cst_16 = arith.constant dense<0.000000e+00> : vector<8x288xf32>
    %15 = tpu.matmul %14, %12, %cst_16 {dimension_numbers = #tpu.dot_dimension_numbers<[1], [0], [0], [1], [0, 0, 1, 1], [], []>} : vector<8x4xbf16>, vector<4x288xbf16>, vector<8x288xf32> -> vector<8x288xf32>
    %16 = arith.addf %10, %15 : vector<8x288xf32>
    %c0_17 = arith.constant 0 : index
    %c0_18 = arith.constant 0 : index
    %c18 = arith.constant 18 : index
    %17 = vector.load %arg2[%c0_17, %c0_18, %c18] : memref<1x4x384xbf16, #tpu.memory_space<vmem>>, vector<1x4x288xbf16>
    %18 = vector.shape_cast %17 : vector<1x4x288xbf16> to vector<4x288xbf16>
    %c3 = arith.constant 3 : index
    %c0_19 = arith.constant 0 : index
    %c0_20 = arith.constant 0 : index
    %19 = vector.load %arg3[%c3, %c0_19, %c0_20] : memref<9x8x4xbf16, #tpu.memory_space<vmem>>, vector<1x8x4xbf16>
    %20 = vector.shape_cast %19 : vector<1x8x4xbf16> to vector<8x4xbf16>
    %cst_21 = arith.constant dense<0.000000e+00> : vector<8x288xf32>
    %21 = tpu.matmul %20, %18, %cst_21 {dimension_numbers = #tpu.dot_dimension_numbers<[1], [0], [0], [1], [0, 0, 1, 1], [], []>} : vector<8x4xbf16>, vector<4x288xbf16>, vector<8x288xf32> -> vector<8x288xf32>
    %22 = arith.addf %16, %21 : vector<8x288xf32>
    %c0_22 = arith.constant 0 : index
    %c0_23 = arith.constant 0 : index
    %c19 = arith.constant 19 : index
    %23 = vector.load %arg2[%c0_22, %c0_23, %c19] : memref<1x4x384xbf16, #tpu.memory_space<vmem>>, vector<1x4x288xbf16>
    %24 = vector.shape_cast %23 : vector<1x4x288xbf16> to vector<4x288xbf16>
    %c4 = arith.constant 4 : index
    %c0_24 = arith.constant 0 : index
    %c0_25 = arith.constant 0 : index
    %25 = vector.load %arg3[%c4, %c0_24, %c0_25] : memref<9x8x4xbf16, #tpu.memory_space<vmem>>, vector<1x8x4xbf16>
    %26 = vector.shape_cast %25 : vector<1x8x4xbf16> to vector<8x4xbf16>
    %cst_26 = arith.constant dense<0.000000e+00> : vector<8x288xf32>
    %27 = tpu.matmul %26, %24, %cst_26 {dimension_numbers = #tpu.dot_dimension_numbers<[1], [0], [0], [1], [0, 0, 1, 1], [], []>} : vector<8x4xbf16>, vector<4x288xbf16>, vector<8x288xf32> -> vector<8x288xf32>
    %28 = arith.addf %22, %27 : vector<8x288xf32>
    %c0_27 = arith.constant 0 : index
    %c0_28 = arith.constant 0 : index
    %c20 = arith.constant 20 : index
    %29 = vector.load %arg2[%c0_27, %c0_28, %c20] : memref<1x4x384xbf16, #tpu.memory_space<vmem>>, vector<1x4x288xbf16>
    %30 = vector.shape_cast %29 : vector<1x4x288xbf16> to vector<4x288xbf16>
    %c5 = arith.constant 5 : index
    %c0_29 = arith.constant 0 : index
    %c0_30 = arith.constant 0 : index
    %31 = vector.load %arg3[%c5, %c0_29, %c0_30] : memref<9x8x4xbf16, #tpu.memory_space<vmem>>, vector<1x8x4xbf16>
    %32 = vector.shape_cast %31 : vector<1x8x4xbf16> to vector<8x4xbf16>
    %cst_31 = arith.constant dense<0.000000e+00> : vector<8x288xf32>
    %33 = tpu.matmul %32, %30, %cst_31 {dimension_numbers = #tpu.dot_dimension_numbers<[1], [0], [0], [1], [0, 0, 1, 1], [], []>} : vector<8x4xbf16>, vector<4x288xbf16>, vector<8x288xf32> -> vector<8x288xf32>
    %34 = arith.addf %28, %33 : vector<8x288xf32>
    %c0_32 = arith.constant 0 : index
    %c0_33 = arith.constant 0 : index
    %c36 = arith.constant 36 : index
    %35 = vector.load %arg2[%c0_32, %c0_33, %c36] : memref<1x4x384xbf16, #tpu.memory_space<vmem>>, vector<1x4x288xbf16>
    %36 = vector.shape_cast %35 : vector<1x4x288xbf16> to vector<4x288xbf16>
    %c6 = arith.constant 6 : index
    %c0_34 = arith.constant 0 : index
    %c0_35 = arith.constant 0 : index
    %37 = vector.load %arg3[%c6, %c0_34, %c0_35] : memref<9x8x4xbf16, #tpu.memory_space<vmem>>, vector<1x8x4xbf16>
    %38 = vector.shape_cast %37 : vector<1x8x4xbf16> to vector<8x4xbf16>
    %cst_36 = arith.constant dense<0.000000e+00> : vector<8x288xf32>
    %39 = tpu.matmul %38, %36, %cst_36 {dimension_numbers = #tpu.dot_dimension_numbers<[1], [0], [0], [1], [0, 0, 1, 1], [], []>} : vector<8x4xbf16>, vector<4x288xbf16>, vector<8x288xf32> -> vector<8x288xf32>
    %40 = arith.addf %34, %39 : vector<8x288xf32>
    %c0_37 = arith.constant 0 : index
    %c0_38 = arith.constant 0 : index
    %c37 = arith.constant 37 : index
    %41 = vector.load %arg2[%c0_37, %c0_38, %c37] : memref<1x4x384xbf16, #tpu.memory_space<vmem>>, vector<1x4x288xbf16>
    %42 = vector.shape_cast %41 : vector<1x4x288xbf16> to vector<4x288xbf16>
    %c7 = arith.constant 7 : index
    %c0_39 = arith.constant 0 : index
    %c0_40 = arith.constant 0 : index
    %43 = vector.load %arg3[%c7, %c0_39, %c0_40] : memref<9x8x4xbf16, #tpu.memory_space<vmem>>, vector<1x8x4xbf16>
    %44 = vector.shape_cast %43 : vector<1x8x4xbf16> to vector<8x4xbf16>
    %cst_41 = arith.constant dense<0.000000e+00> : vector<8x288xf32>
    %45 = tpu.matmul %44, %42, %cst_41 {dimension_numbers = #tpu.dot_dimension_numbers<[1], [0], [0], [1], [0, 0, 1, 1], [], []>} : vector<8x4xbf16>, vector<4x288xbf16>, vector<8x288xf32> -> vector<8x288xf32>
    %46 = arith.addf %40, %45 : vector<8x288xf32>
    %c0_42 = arith.constant 0 : index
    %c0_43 = arith.constant 0 : index
    %c38 = arith.constant 38 : index
    %47 = vector.load %arg2[%c0_42, %c0_43, %c38] : memref<1x4x384xbf16, #tpu.memory_space<vmem>>, vector<1x4x288xbf16>
    %48 = vector.shape_cast %47 : vector<1x4x288xbf16> to vector<4x288xbf16>
    %c8 = arith.constant 8 : index
    %c0_44 = arith.constant 0 : index
    %c0_45 = arith.constant 0 : index
    %49 = vector.load %arg3[%c8, %c0_44, %c0_45] : memref<9x8x4xbf16, #tpu.memory_space<vmem>>, vector<1x8x4xbf16>
    %50 = vector.shape_cast %49 : vector<1x8x4xbf16> to vector<8x4xbf16>
    %cst_46 = arith.constant dense<0.000000e+00> : vector<8x288xf32>
    %51 = tpu.matmul %50, %48, %cst_46 {dimension_numbers = #tpu.dot_dimension_numbers<[1], [0], [0], [1], [0, 0, 1, 1], [], []>} : vector<8x4xbf16>, vector<4x288xbf16>, vector<8x288xf32> -> vector<8x288xf32>
    %52 = arith.addf %46, %51 : vector<8x288xf32>
    %53 = arith.truncf %52 : vector<8x288xf32> to vector<8x288xbf16>
    %c0_47 = arith.constant 0 : index
    %c0_48 = arith.constant 0 : index
    %c0_49 = arith.constant 0 : index
    %54 = vector.load %arg5[%c0_47, %c0_48, %c0_49] : memref<1x8x288xbf16, #tpu.memory_space<vmem>>, vector<1x8x288xbf16>
    %55 = vector.shape_cast %54 : vector<1x8x288xbf16> to vector<8x288xbf16>
    %56 = vector.shape_cast %53 : vector<8x288xbf16> to vector<1x8x288xbf16>
    tpu.vector_store %arg5[%c0_47, %c0_48, %c0_49], %56 {strides = array<i32>} : memref<1x8x288xbf16, #tpu.memory_space<vmem>>, vector<1x8x288xbf16>,
    %c0_50 = arith.constant 0 : index
    %c0_51 = arith.constant 0 : index
    %57 = vector.load %arg4[%c0_50, %c0_51] : memref<1x288xf32, #tpu.memory_space<vmem>>, vector<1x288xf32>
    %58 = vector.broadcast %57 : vector<1x288xf32> to vector<8x288xf32>
    %59 = arith.mulf %52, %58 : vector<8x288xf32>
    %cst_52 = arith.constant dense<0.000000e+00> : vector<8xf32>
    %60 = vector.multi_reduction <add>, %59, %cst_52 [1] : vector<8x288xf32> to vector<8xf32>
    %61 = vector.shape_cast %60 : vector<8xf32> to vector<8x1xf32>
    %c0_53 = arith.constant 0 : index
    %c0_54 = arith.constant 0 : index
    %c0_55 = arith.constant 0 : index
    %c0_56 = arith.constant 0 : index
    %62 = vector.load %arg6[%c0_53, %c0_54, %c0_55, %c0_56] : memref<1x1x8x1xf32, #tpu.memory_space<vmem>>, vector<1x1x8x1xf32>
    %63 = vector.shape_cast %62 : vector<1x1x8x1xf32> to vector<8x1xf32>
    %64 = vector.shape_cast %61 : vector<8x1xf32> to vector<1x1x8x1xf32>
    tpu.vector_store %arg6[%c0_53, %c0_54, %c0_55, %c0_56], %64 {strides = array<i32>} : memref<1x1x8x1xf32, #tpu.memory_space<vmem>>, vector<1x1x8x1xf32>,
    %65 = arith.mulf %52, %59 : vector<8x288xf32>
    %cst_57 = arith.constant dense<0.000000e+00> : vector<8xf32>
    %66 = vector.multi_reduction <add>, %65, %cst_57 [1] : vector<8x288xf32> to vector<8xf32>
    %67 = vector.shape_cast %66 : vector<8xf32> to vector<8x1xf32>
    %c0_58 = arith.constant 0 : index
    %c0_59 = arith.constant 0 : index
    %c0_60 = arith.constant 0 : index
    %c0_61 = arith.constant 0 : index
    %68 = vector.load %arg7[%c0_58, %c0_59, %c0_60, %c0_61] : memref<1x1x8x1xf32, #tpu.memory_space<vmem>>, vector<1x1x8x1xf32>
    %69 = vector.shape_cast %68 : vector<1x1x8x1xf32> to vector<8x1xf32>
    %70 = vector.shape_cast %67 : vector<8x1xf32> to vector<1x1x8x1xf32>
    tpu.vector_store %arg7[%c0_58, %c0_59, %c0_60, %c0_61], %70 {strides = array<i32>} : memref<1x1x8x1xf32, #tpu.memory_space<vmem>>, vector<1x1x8x1xf32>,
    return
  }
  func.func @transform_0(%arg0: i32, %arg1: i32) -> (i32, i32, i32) {
    %c0_i32 = arith.constant 0 : i32
    %c0_i32_0 = arith.constant 0 : i32
    %c0_i32_1 = arith.constant 0 : i32
    return %arg0, %c0_i32, %c0_i32_0 : i32, i32, i32
  }
  func.func @transform_1(%arg0: i32, %arg1: i32) -> (i32, i32, i32) {
    %c0_i32 = arith.constant 0 : i32
    %c0_i32_0 = arith.constant 0 : i32
    %c0_i32_1 = arith.constant 0 : i32
    %c0_i32_2 = arith.constant 0 : i32
    return %c0_i32, %c0_i32_0, %c0_i32_1 : i32, i32, i32
  }
  func.func @transform_2(%arg0: i32, %arg1: i32) -> (i32, i32) {
    %c0_i32 = arith.constant 0 : i32
    %c0_i32_0 = arith.constant 0 : i32
    %c0_i32_1 = arith.constant 0 : i32
    return %c0_i32, %c0_i32_0 : i32, i32
  }
  func.func @transform_3(%arg0: i32, %arg1: i32) -> (i32, i32, i32) {
    %c0_i32 = arith.constant 0 : i32
    %c0_i32_0 = arith.constant 0 : i32
    return %arg0, %c0_i32, %arg1 : i32, i32, i32
  }
  func.func @transform_4(%arg0: i32, %arg1: i32) -> (i32, i32, i32, i32) {
    %c0_i32 = arith.constant 0 : i32
    %c0_i32_0 = arith.constant 0 : i32
    %c0_i32_1 = arith.constant 0 : i32
    return %arg0, %arg1, %c0_i32, %c0_i32_0 : i32, i32, i32, i32
  }
  func.func @transform_5(%arg0: i32, %arg1: i32) -> (i32, i32, i32, i32) {
    %c0_i32 = arith.constant 0 : i32
    %c0_i32_0 = arith.constant 0 : i32
    %c0_i32_1 = arith.constant 0 : i32
    return %arg0, %arg1, %c0_i32, %c0_i32_0 : i32, i32, i32, i32
  }
}

module attributes {stable_mosaic.version = 11 : i64} {
  func.func @_bn_relu_kernel(%arg0: i32, %arg1: i32, %arg2: memref<1x8x16x18xbf16, #tpu.memory_space<vmem>>, %arg3: memref<8x1x1xf32, #tpu.memory_space<vmem>>, %arg4: memref<8x1x1xf32, #tpu.memory_space<vmem>>, %arg5: memref<1x8x16x16xf32, #tpu.memory_space<vmem>>) attributes {dimension_semantics = [#tpu.dimension_semantics<parallel>, #tpu.dimension_semantics<parallel>], iteration_bounds = array<i64: 2, 1>, scalar_prefetch = 0 : i64, scratch_operands = 0 : i64, tpu.core_type = #tpu.core_type<tc>, window_params = [{transform_indices = @transform_0, window_bounds = array<i64: 1, 8, 16, 18>}, {pipeline_mode = #tpu.pipeline_mode<synchronous>, transform_indices = @transform_1, window_bounds = array<i64: 8, 1, 1>}, {pipeline_mode = #tpu.pipeline_mode<synchronous>, transform_indices = @transform_2, window_bounds = array<i64: 8, 1, 1>}, {transform_indices = @transform_3, window_bounds = array<i64: 1, 8, 16, 16>}]} {
    %c0 = arith.constant 0 : index
    %c0_0 = arith.constant 0 : index
    %c0_1 = arith.constant 0 : index
    %c0_2 = arith.constant 0 : index
    %0 = vector.load %arg2[%c0, %c0_0, %c0_1, %c0_2] : memref<1x8x16x18xbf16, #tpu.memory_space<vmem>>, vector<1x8x16x16xbf16>
    %1 = vector.shape_cast %0 : vector<1x8x16x16xbf16> to vector<8x16x16xbf16>
    %2 = arith.extf %1 : vector<8x16x16xbf16> to vector<8x16x16xf32>
    %c0_3 = arith.constant 0 : index
    %c0_4 = arith.constant 0 : index
    %c0_5 = arith.constant 0 : index
    %3 = vector.load %arg3[%c0_3, %c0_4, %c0_5] : memref<8x1x1xf32, #tpu.memory_space<vmem>>, vector<8x1x1xf32>
    %4 = vector.broadcast %3 : vector<8x1x1xf32> to vector<8x16x16xf32>
    %5 = arith.mulf %2, %4 : vector<8x16x16xf32>
    %c0_6 = arith.constant 0 : index
    %c0_7 = arith.constant 0 : index
    %c0_8 = arith.constant 0 : index
    %6 = vector.load %arg4[%c0_6, %c0_7, %c0_8] : memref<8x1x1xf32, #tpu.memory_space<vmem>>, vector<8x1x1xf32>
    %7 = vector.broadcast %6 : vector<8x1x1xf32> to vector<8x16x16xf32>
    %8 = arith.addf %5, %7 : vector<8x16x16xf32>
    %cst = arith.constant 0.000000e+00 : f32
    %9 = vector.broadcast %cst : f32 to vector<8x16x16xf32>
    %10 = arith.maximumf %8, %9 : vector<8x16x16xf32>
    %c0_9 = arith.constant 0 : index
    %c0_10 = arith.constant 0 : index
    %c0_11 = arith.constant 0 : index
    %c0_12 = arith.constant 0 : index
    %11 = vector.load %arg5[%c0_9, %c0_10, %c0_11, %c0_12] : memref<1x8x16x16xf32, #tpu.memory_space<vmem>>, vector<1x8x16x16xf32>
    %12 = vector.shape_cast %11 : vector<1x8x16x16xf32> to vector<8x16x16xf32>
    %13 = vector.shape_cast %10 : vector<8x16x16xf32> to vector<1x8x16x16xf32>
    tpu.vector_store %arg5[%c0_9, %c0_10, %c0_11, %c0_12], %13 {strides = array<i32>} : memref<1x8x16x16xf32, #tpu.memory_space<vmem>>, vector<1x8x16x16xf32>,
    return
  }
  func.func @transform_0(%arg0: i32, %arg1: i32) -> (i32, i32, i32, i32) {
    %c0_i32 = arith.constant 0 : i32
    %c0_i32_0 = arith.constant 0 : i32
    %c0_i32_1 = arith.constant 0 : i32
    return %arg0, %c0_i32, %arg1, %c0_i32_0 : i32, i32, i32, i32
  }
  func.func @transform_1(%arg0: i32, %arg1: i32) -> (i32, i32, i32) {
    %c0_i32 = arith.constant 0 : i32
    %c0_i32_0 = arith.constant 0 : i32
    %c0_i32_1 = arith.constant 0 : i32
    %c0_i32_2 = arith.constant 0 : i32
    return %c0_i32, %c0_i32_0, %c0_i32_1 : i32, i32, i32
  }
  func.func @transform_2(%arg0: i32, %arg1: i32) -> (i32, i32, i32) {
    %c0_i32 = arith.constant 0 : i32
    %c0_i32_0 = arith.constant 0 : i32
    %c0_i32_1 = arith.constant 0 : i32
    %c0_i32_2 = arith.constant 0 : i32
    return %c0_i32, %c0_i32_0, %c0_i32_1 : i32, i32, i32
  }
  func.func @transform_3(%arg0: i32, %arg1: i32) -> (i32, i32, i32, i32) {
    %c0_i32 = arith.constant 0 : i32
    %c0_i32_0 = arith.constant 0 : i32
    %c0_i32_1 = arith.constant 0 : i32
    return %arg0, %c0_i32, %arg1, %c0_i32_0 : i32, i32, i32, i32
  }
}

</mosaic_0001>

<llo_original>
// kernel: conv2d_batchnorm_relu.3
$region0: #{conv2d_batchnorm_relu.3}
  #allocation0 [shape = 'u32[]', space=smem, size = 0x4, offset = 0x4, fixed_abs, tag = 'smem constant byte address 0x4 - core index']
  #allocation1 [shape = 'u32[144,128]{1,0:T(1,128)}', space=vmem, size = 0x12000, scoped, tag = 'internal scratch']
  %s0 = inlined_call_operand.vmem [shape: bf16[2,8,16,18], index: 0, kind: input, shape index: {}]
  %s1 = inlined_call_operand.vmem [shape: f32[8,1,1], index: 1, kind: input, shape index: {}]
  %s2 = inlined_call_operand.vmem [shape: f32[8,1,1], index: 2, kind: input, shape index: {}]
  %s3 = inlined_call_operand.hbm [shape: f32[2,8,16,16], index: 3, kind: output, shape index: {}]
  %s4 = sld [smem:[#allocation0]]
  $region45: #{conv2d_batchnorm_relu.3} parent=0
    _
  %s6 = ssub.s32 1, %s4
  %s7 = scalar_select 0, %s6, %s4
  $region1: #{conv2d_batchnorm_relu.3} parent=0
    #allocation2 [shape = 'u8[131072]{0}', space=vmem, size = 0x20000, scoped, tag = 'output window, operand 0']
    #allocation3 [shape = 's32[2]{0}', space=sflag, size = 0x8, scoped, tag = 'scoped memory for conv2d_batchnorm_relu.3']
    %8 = vsyncpa [#allocation3], 0
    %s9 = scalar_lea.sflag [#allocation3], 1
    %10 = vsyncpa %s9, 0
    loop: start=0, step=1, limit=4
    $region2: #{conv2d_batchnorm_relu.3} parent=1 // loop_pre_header
      _
    $region3: #{conv2d_batchnorm_relu.3} parent=1 // loop_header
      %s12 = sphi 0, %s16
      %p13 = scmp.ge.s32.totalorder %s12, 4
      %s19 = sphi 0, %s31
      %s20 = sphi 0, %s27
      %s21 = sphi 0, %s19
      %s22 = sphi 0, %s20
      %s23 = sphi 0, %s21
      %s24 = sphi 0, %s22
      %s36 = sphi 0, %s38
      %s39 = sphi 0, %s36
      %s40 = sphi 0, %s39
      %s56 = sphi 0, %s40
      %s60 = sphi 0, %s60
      %s62 = sphi 0, %s60
      %s63 = sphi 0, %s62
      %s77 = sphi 0, %s63
      %s81 = sphi 0, %s81
      %s83 = sphi 0, %s81
      %s84 = sphi 0, %s83
      %s98 = sphi 0, %s84
      %s106 = sphi 0, %s108
      %s109 = sphi 0, %s106
      %s110 = sphi 0, %s109
      %s126 = sphi 0, %s110
    $region4: #{conv2d_batchnorm_relu.3} parent=1 // loop_header_branch
      %15 = sbr.rel (%p13) target = $region8
    $region5: #{conv2d_batchnorm_relu.3} parent=1 // loop_body
      %s17 = ssub.s32 %s12, 1
      %s18 = ssub.s32 %s12, 2
      %s25 = sadd.s32 1, %s20
      %p26 = scmp.ge.s32.totalorder %s25, 1
      %s27 = scalar_select %p26, 0, %s25
      %s28 = sadd.s32 1, %s19
      %s29 = scalar_select %p26, %s28, %s19
      %p30 = scmp.ge.s32.totalorder %s29, 2
      %s31 = scalar_select %p30, 0, %s29
      %s32 = ssub.s32 %s19, %s31
      %s33 = ssub.s32 %s20, %s27
      %s34 = sor.u32 %s32, %s33
      %p35 = scmp.eq.s32.totalorder %s34, 0
      %s37 = sadd.s32 %s36, 1
      %s38 = scalar_select %p35, %s36, %s37
      %p41 = pneg %p35
      %p42 = scmp.eq.s32.totalorder %s12, 1
      %p43 = por %p41, %p42
      %p44 = scmp.ne.s32.totalorder %s36, %s39
      %p45 = scmp.eq.s32.totalorder %s12, 0
      %p46 = por %p44, %p45
      %p47 = scmp.ne.s32.totalorder %s36, %s39
      %p48 = scmp.eq.s32.totalorder %s17, 1
      %p49 = por %p47, %p48
      %p50 = scmp.ne.s32.totalorder %s39, %s40
      %p51 = scmp.eq.s32.totalorder %s17, 0
      %p52 = por %p50, %p51
      %p53 = scmp.ne.s32.totalorder %s39, %s40
      %p54 = scmp.eq.s32.totalorder %s18, 1
      %p55 = por %p53, %p54
      %p57 = scmp.ne.s32.totalorder %s40, %s56
      %p58 = scmp.eq.s32.totalorder %s18, 0
      %p59 = por %p57, %p58
      %s61 = sadd.s32 %s60, 1
      %p64 = scmp.eq.s32.totalorder %s12, 1
      %p65 = scmp.ne.s32.totalorder %s60, %s62
      %p66 = scmp.eq.s32.totalorder %s12, 0
      %p67 = por %p65, %p66
      %p68 = scmp.ne.s32.totalorder %s60, %s62
      %p69 = scmp.eq.s32.totalorder %s17, 1
      %p70 = por %p68, %p69
      %p71 = scmp.ne.s32.totalorder %s62, %s63
      %p72 = scmp.eq.s32.totalorder %s17, 0
      %p73 = por %p71, %p72
      %p74 = scmp.ne.s32.totalorder %s62, %s63
      %p75 = scmp.eq.s32.totalorder %s18, 1
      %p76 = por %p74, %p75
      %p78 = scmp.ne.s32.totalorder %s63, %s77
      %p79 = scmp.eq.s32.totalorder %s18, 0
      %p80 = por %p78, %p79
      %s82 = sadd.s32 %s81, 1
      %p85 = scmp.eq.s32.totalorder %s12, 1
      %p86 = scmp.ne.s32.totalorder %s81, %s83
      %p87 = scmp.eq.s32.totalorder %s12, 0
      %p88 = por %p86, %p87
      %p89 = scmp.ne.s32.totalorder %s81, %s83
      %p90 = scmp.eq.s32.totalorder %s17, 1
      %p91 = por %p89, %p90
      %p92 = scmp.ne.s32.totalorder %s83, %s84
      %p93 = scmp.eq.s32.totalorder %s17, 0
      %p94 = por %p92, %p93
      %p95 = scmp.ne.s32.totalorder %s83, %s84
      %p96 = scmp.eq.s32.totalorder %s18, 1
      %p97 = por %p95, %p96
      %p99 = scmp.ne.s32.totalorder %s84, %s98
      %p100 = scmp.eq.s32.totalorder %s18, 0
      %p101 = por %p99, %p100
      %s102 = ssub.s32 %s19, %s31
      %s103 = ssub.s32 %s20, %s27
      %s104 = sor.u32 %s102, %s103
      %p105 = scmp.eq.s32.totalorder %s104, 0
      %s107 = sadd.s32 %s106, 1
      %s108 = scalar_select %p105, %s106, %s107
      %p111 = pneg %p105
      %p112 = scmp.eq.s32.totalorder %s12, 1
      %p113 = por %p111, %p112
      %p114 = scmp.ne.s32.totalorder %s106, %s109
      %p115 = scmp.eq.s32.totalorder %s12, 0
      %p116 = por %p114, %p115
      %p117 = scmp.ne.s32.totalorder %s106, %s109
      %p118 = scmp.eq.s32.totalorder %s17, 1
      %p119 = por %p117, %p118
      %p120 = scmp.ne.s32.totalorder %s109, %s110
      %p121 = scmp.eq.s32.totalorder %s17, 0
      %p122 = por %p120, %p121
      %p123 = scmp.ne.s32.totalorder %s109, %s110
      %p124 = scmp.eq.s32.totalorder %s18, 1
      %p125 = por %p123, %p124
      %p127 = scmp.ne.s32.totalorder %s110, %s126
      %p128 = scmp.eq.s32.totalorder %s18, 0
      %p129 = por %p127, %p128
      %p130 = scmp.le.s32.totalorder 1, %s12
      %p131 = scmp.lt.s32.totalorder %s12, 3
      %p132 = pnand %p130, %p131
      %p133 = pneg %p132
      // Predicated region
      $region9: #{conv2d_batchnorm_relu.3} parent=5 // pred_check
        _
      $region10: #{conv2d_batchnorm_relu.3} parent=5 // pred_check_branch
        %135 = sbr.rel (%p132) target = $region12
      $region11: #{conv2d_batchnorm_relu.3} parent=5 // pred_region
        %s136 = ssub.s32 %s12, 1
        // Predicated region
        $region13: #{conv2d_batchnorm_relu.3} parent=11 // pred_check
          %p137 = pneg %p73
        $region14: #{conv2d_batchnorm_relu.3} parent=11 // pred_check_branch
          %139 = sbr.rel (%p137) target = $region16
        $region15: #{conv2d_batchnorm_relu.3} parent=11 // pred_region
          _
        $region16: #{conv2d_batchnorm_relu.3} parent=11 // pred_fallthru
          _
        // Predicated region
        $region17: #{conv2d_batchnorm_relu.3} parent=11 // pred_check
          %p140 = pneg %p94
        $region18: #{conv2d_batchnorm_relu.3} parent=11 // pred_check_branch
          %142 = sbr.rel (%p140) target = $region20
        $region19: #{conv2d_batchnorm_relu.3} parent=11 // pred_region
          _
        $region20: #{conv2d_batchnorm_relu.3} parent=11 // pred_fallthru
          _
      $region12: #{conv2d_batchnorm_relu.3} parent=5 // pred_fallthru
        _
      %p143 = scmp.lt.s32.totalorder %s12, 2
      // Predicated region
      $region21: #{conv2d_batchnorm_relu.3} parent=5 // pred_check
        %p144 = pneg %p143
      $region22: #{conv2d_batchnorm_relu.3} parent=5 // pred_check_branch
        %146 = sbr.rel (%p144) target = $region24
      $region23: #{conv2d_batchnorm_relu.3} parent=5 // pred_region
        // Predicated region
        $region25: #{conv2d_batchnorm_relu.3} parent=23 // pred_check
          %p147 = pneg %p46
        $region26: #{conv2d_batchnorm_relu.3} parent=23 // pred_check_branch
          %149 = sbr.rel (%p147) target = $region28
        $region27: #{conv2d_batchnorm_relu.3} parent=23 // pred_region
          %s150 = smul.u32 2, %s20
          %p151 = scmp.lt.s32.totalorder %s19, 1
          %s152 = scalar_select %p151, %s19, 1
          %p153 = scmp.lt.s32.totalorder %s150, 1
          %s154 = scalar_select %p153, %s150, 1
          %s155 = smul.addr %s152, 16
          %s156 = sadd.s32 %s154, %s155
          %s157 = smul.addr %s156, 4
          %s158 = scalar_lea.vmem %s0, %s157
          %s159 = smul.u32 2, %s20
        $region28: #{conv2d_batchnorm_relu.3} parent=23 // pred_fallthru
          _
      $region24: #{conv2d_batchnorm_relu.3} parent=5 // pred_fallthru
        _
      %p160 = scmp.le.s32.totalorder 1, %s12
      %p161 = scmp.lt.s32.totalorder %s12, 3
      %p162 = pnand %p160, %p161
      %p163 = pneg %p162
      // Predicated region
      $region29: #{conv2d_batchnorm_relu.3} parent=5 // pred_check
        _
      $region30: #{conv2d_batchnorm_relu.3} parent=5 // pred_check_branch
        %165 = sbr.rel (%p162) target = $region32
      $region31: #{conv2d_batchnorm_relu.3} parent=5 // pred_region
        %s166 = ssub.s32 %s12, 1
        %s167 = smul.u32 2, %s22
        %p168 = scmp.lt.s32.totalorder %s21, 1
        %s169 = scalar_select %p168, %s21, 1
        %p170 = scmp.lt.s32.totalorder %s167, 1
        %s171 = scalar_select %p170, %s167, 1
        %s172 = smul.addr %s169, 16
        %s173 = sadd.s32 %s171, %s172
        %s174 = smul.addr %s173, 4
        %s175 = scalar_lea.vmem %s0, %s174
        %p176 = pneg %p52
        %p177 = pneg %p49
        %p178 = pneg %p73
        %p179 = pneg %p70
        %p180 = pneg %p94
        %p181 = pneg %p91
        %p182 = pneg %p122
        %p183 = pneg %p119
        %s184 = sand.u32 %s109, 1
        %s185 = scalar_lea.sflag [#allocation3], %s184
        %s186 = sand.u32 %s109, 1
        %s187 = smul.addr %s186, 128
        %s188 = scalar_lea.vmem [#allocation2], %s187
        %s189 = smul.u32 2, %s22
        %p190 = scmp.lt.s32.totalorder %s21, 1
        %s191 = scalar_select %p190, %s21, 1
        %p192 = scmp.lt.s32.totalorder %s189, 1
        %s193 = scalar_select %p192, %s189, 1
        %s194 = smul.addr %s191, 16
        %s195 = sadd.s32 %s193, %s194
        %s196 = smul.addr %s195, 4
        %s197 = scalar_lea.vmem %s0, %s196
        %s198 = smul.u32 2, %s22
        %s199 = smul.u32 2, %s22
        %v200 = vld [vmem:[%s197] sm:$0xf]
        %v201 = vld [vmem:[%s197 + $0x4] sm:$0xf]
        %v202 = vld [vmem:[%s197 + $0x8] sm:$0xf]
        %v203 = vld [vmem:[%s197 + $0xc] sm:$0xf]
        %v204 = vld [vmem:[%s197 + $0x10] sm:$0xf]
        %v205 = vld [vmem:[%s197 + $0x14] sm:$0xf]
        %v206 = vld [vmem:[%s197 + $0x18] sm:$0xf]
        %v207 = vld [vmem:[%s197 + $0x1c] sm:$0xf]
        %v208 = vld [vmem:[%s197 + $0x20] sm:$0xf]
        %v209 = vld [vmem:[%s197 + $0x24] sm:$0xf]
        %v210 = vld [vmem:[%s197 + $0x28] sm:$0xf]
        %v211 = vld [vmem:[%s197 + $0x2c] sm:$0xf]
        %v212 = vld [vmem:[%s197 + $0x30] sm:$0xf]
        %v213 = vld [vmem:[%s197 + $0x34] sm:$0xf]
        %v214 = vld [vmem:[%s197 + $0x38] sm:$0xf]
        %v215 = vld [vmem:[%s197 + $0x3c] sm:$0xf]
        %v216 = vunpack.c.l.bf16 %v200
        %v217 = vunpack.c.l.bf16 %v201
        %v218 = vunpack.c.l.bf16 %v202
        %v219 = vunpack.c.l.bf16 %v203
        %v220 = vunpack.c.l.bf16 %v204
        %v221 = vunpack.c.l.bf16 %v205
        %v222 = vunpack.c.l.bf16 %v206
        %v223 = vunpack.c.l.bf16 %v207
        %v224 = vunpack.c.l.bf16 %v208
        %v225 = vunpack.c.l.bf16 %v209
        %v226 = vunpack.c.l.bf16 %v210
        %v227 = vunpack.c.l.bf16 %v211
        %v228 = vunpack.c.l.bf16 %v212
        %v229 = vunpack.c.l.bf16 %v213
        %v230 = vunpack.c.l.bf16 %v214
        %v231 = vunpack.c.l.bf16 %v215
        %v232 = vld [vmem:[%s1] sm:$0x1]
        %v233 = vld [vmem:[%s1 + $0x1] sm:$0x1]
        %v234 = vld [vmem:[%s1 + $0x2] sm:$0x1]
        %v235 = vld [vmem:[%s1 + $0x3] sm:$0x1]
        %v236 = vld [vmem:[%s1 + $0x4] sm:$0x1]
        %v237 = vld [vmem:[%s1 + $0x5] sm:$0x1]
        %v238 = vld [vmem:[%s1 + $0x6] sm:$0x1]
        %v239 = vld [vmem:[%s1 + $0x7] sm:$0x1]
        %v248 = vlaneseq
        %v249 = vshrl.u32 %v248, 7
        %v250 = vsub.s32 0, %v249
        %v251 = vrot.slane %v232, %v250
        %v252 = vlaneseq
        %v253 = vshrl.u32 %v252, 7
        %v254 = vsub.s32 0, %v253
        %v255 = vrot.slane %v233, %v254
        %v256 = vlaneseq
        %v257 = vshrl.u32 %v256, 7
        %v258 = vsub.s32 0, %v257
        %v259 = vrot.slane %v234, %v258
        %v260 = vlaneseq
        %v261 = vshrl.u32 %v260, 7
        %v262 = vsub.s32 0, %v261
        %v263 = vrot.slane %v235, %v262
        %v264 = vlaneseq
        %v265 = vshrl.u32 %v264, 7
        %v266 = vsub.s32 0, %v265
        %v267 = vrot.slane %v236, %v266
        %v268 = vlaneseq
        %v269 = vshrl.u32 %v268, 7
        %v270 = vsub.s32 0, %v269
        %v271 = vrot.slane %v237, %v270
        %v272 = vlaneseq
        %v273 = vshrl.u32 %v272, 7
        %v274 = vsub.s32 0, %v273
        %v275 = vrot.slane %v238, %v274
        %v276 = vlaneseq
        %v277 = vshrl.u32 %v276, 7
        %v278 = vsub.s32 0, %v277
        %v279 = vrot.slane %v239, %v278
        %280 = vset.pattern.permute.xlu0 0
        %281 = vperm.xlu0 %280, %v251
        %v282 = vpop.permute.xlu0 %281
        %284 = vset.pattern.permute.xlu0 0
        %285 = vperm.xlu0 %284, %v255
        %v286 = vpop.permute.xlu0 %285
        %288 = vset.pattern.permute.xlu0 0
        %289 = vperm.xlu0 %288, %v259
        %v290 = vpop.permute.xlu0 %289
        %292 = vset.pattern.permute.xlu0 0
        %293 = vperm.xlu0 %292, %v263
        %v294 = vpop.permute.xlu0 %293
        %296 = vset.pattern.permute.xlu0 0
        %297 = vperm.xlu0 %296, %v267
        %v298 = vpop.permute.xlu0 %297
        %300 = vset.pattern.permute.xlu0 0
        %301 = vperm.xlu0 %300, %v271
        %v302 = vpop.permute.xlu0 %301
        %304 = vset.pattern.permute.xlu0 0
        %305 = vperm.xlu0 %304, %v275
        %v306 = vpop.permute.xlu0 %305
        %308 = vset.pattern.permute.xlu0 0
        %309 = vperm.xlu0 %308, %v279
        %v310 = vpop.permute.xlu0 %309
        %v312 = vmul.f32 %v216, %v282
        %v313 = vmul.f32 %v217, %v282
        %v314 = vmul.f32 %v218, %v286
        %v315 = vmul.f32 %v219, %v286
        %v316 = vmul.f32 %v220, %v290
        %v317 = vmul.f32 %v221, %v290
        %v318 = vmul.f32 %v222, %v294
        %v319 = vmul.f32 %v223, %v294
        %v320 = vmul.f32 %v224, %v298
        %v321 = vmul.f32 %v225, %v298
        %v322 = vmul.f32 %v226, %v302
        %v323 = vmul.f32 %v227, %v302
        %v324 = vmul.f32 %v228, %v306
        %v325 = vmul.f32 %v229, %v306
        %v326 = vmul.f32 %v230, %v310
        %v327 = vmul.f32 %v231, %v310
        %v328 = vld [vmem:[%s2] sm:$0x1]
        %v329 = vld [vmem:[%s2 + $0x1] sm:$0x1]
        %v330 = vld [vmem:[%s2 + $0x2] sm:$0x1]
        %v331 = vld [vmem:[%s2 + $0x3] sm:$0x1]
        %v332 = vld [vmem:[%s2 + $0x4] sm:$0x1]
        %v333 = vld [vmem:[%s2 + $0x5] sm:$0x1]
        %v334 = vld [vmem:[%s2 + $0x6] sm:$0x1]
        %v335 = vld [vmem:[%s2 + $0x7] sm:$0x1]
        %v344 = vlaneseq
        %v345 = vshrl.u32 %v344, 7
        %v346 = vsub.s32 0, %v345
        %v347 = vrot.slane %v328, %v346
        %v348 = vlaneseq
        %v349 = vshrl.u32 %v348, 7
        %v350 = vsub.s32 0, %v349
        %v351 = vrot.slane %v329, %v350
        %v352 = vlaneseq
        %v353 = vshrl.u32 %v352, 7
        %v354 = vsub.s32 0, %v353
        %v355 = vrot.slane %v330, %v354
        %v356 = vlaneseq
        %v357 = vshrl.u32 %v356, 7
        %v358 = vsub.s32 0, %v357
        %v359 = vrot.slane %v331, %v358
        %v360 = vlaneseq
        %v361 = vshrl.u32 %v360, 7
        %v362 = vsub.s32 0, %v361
        %v363 = vrot.slane %v332, %v362
        %v364 = vlaneseq
        %v365 = vshrl.u32 %v364, 7
        %v366 = vsub.s32 0, %v365
        %v367 = vrot.slane %v333, %v366
        %v368 = vlaneseq
        %v369 = vshrl.u32 %v368, 7
        %v370 = vsub.s32 0, %v369
        %v371 = vrot.slane %v334, %v370
        %v372 = vlaneseq
        %v373 = vshrl.u32 %v372, 7
        %v374 = vsub.s32 0, %v373
        %v375 = vrot.slane %v335, %v374
        %376 = vset.pattern.permute.xlu0 0
        %377 = vperm.xlu0 %376, %v347
        %v378 = vpop.permute.xlu0 %377
        %380 = vset.pattern.permute.xlu0 0
        %381 = vperm.xlu0 %380, %v351
        %v382 = vpop.permute.xlu0 %381
        %384 = vset.pattern.permute.xlu0 0
        %385 = vperm.xlu0 %384, %v355
        %v386 = vpop.permute.xlu0 %385
        %388 = vset.pattern.permute.xlu0 0
        %389 = vperm.xlu0 %388, %v359
        %v390 = vpop.permute.xlu0 %389
        %392 = vset.pattern.permute.xlu0 0
        %393 = vperm.xlu0 %392, %v363
        %v394 = vpop.permute.xlu0 %393
        %396 = vset.pattern.permute.xlu0 0
        %397 = vperm.xlu0 %396, %v367
        %v398 = vpop.permute.xlu0 %397
        %400 = vset.pattern.permute.xlu0 0
        %401 = vperm.xlu0 %400, %v371
        %v402 = vpop.permute.xlu0 %401
        %404 = vset.pattern.permute.xlu0 0
        %405 = vperm.xlu0 %404, %v375
        %v406 = vpop.permute.xlu0 %405
        %v408 = vadd.f32 %v312, %v378
        %v409 = vadd.f32 %v313, %v378
        %v410 = vadd.f32 %v314, %v382
        %v411 = vadd.f32 %v315, %v382
        %v412 = vadd.f32 %v316, %v386
        %v413 = vadd.f32 %v317, %v386
        %v414 = vadd.f32 %v318, %v390
        %v415 = vadd.f32 %v319, %v390
        %v416 = vadd.f32 %v320, %v394
        %v417 = vadd.f32 %v321, %v394
        %v418 = vadd.f32 %v322, %v398
        %v419 = vadd.f32 %v323, %v398
        %v420 = vadd.f32 %v324, %v402
        %v421 = vadd.f32 %v325, %v402
        %v422 = vadd.f32 %v326, %v406
        %v423 = vadd.f32 %v327, %v406
        %v424 = vmax.f32 %v408, 0.0
        %v425 = vmax.f32 %v409, 0.0
        %v426 = vmax.f32 %v410, 0.0
        %v427 = vmax.f32 %v411, 0.0
        %v428 = vmax.f32 %v412, 0.0
        %v429 = vmax.f32 %v413, 0.0
        %v430 = vmax.f32 %v414, 0.0
        %v431 = vmax.f32 %v415, 0.0
        %v432 = vmax.f32 %v416, 0.0
        %v433 = vmax.f32 %v417, 0.0
        %v434 = vmax.f32 %v418, 0.0
        %v435 = vmax.f32 %v419, 0.0
        %v436 = vmax.f32 %v420, 0.0
        %v437 = vmax.f32 %v421, 0.0
        %v438 = vmax.f32 %v422, 0.0
        %v439 = vmax.f32 %v423, 0.0
        %vm440 = vcmask 130048
        %441 = vst.msk [vmem:[%s188] sm:$0xff] %vm440, %v424
        %442 = vst.msk [vmem:[%s188 + $0x8] sm:$0xff] %vm440, %v425
        %443 = vst.msk [vmem:[%s188 + $0x10] sm:$0xff] %vm440, %v426
        %444 = vst.msk [vmem:[%s188 + $0x18] sm:$0xff] %vm440, %v427
        %445 = vst.msk [vmem:[%s188 + $0x20] sm:$0xff] %vm440, %v428
        %446 = vst.msk [vmem:[%s188 + $0x28] sm:$0xff] %vm440, %v429
        %447 = vst.msk [vmem:[%s188 + $0x30] sm:$0xff] %vm440, %v430
        %448 = vst.msk [vmem:[%s188 + $0x38] sm:$0xff] %vm440, %v431
        %449 = vst.msk [vmem:[%s188 + $0x40] sm:$0xff] %vm440, %v432
        %450 = vst.msk [vmem:[%s188 + $0x48] sm:$0xff] %vm440, %v433
        %451 = vst.msk [vmem:[%s188 + $0x50] sm:$0xff] %vm440, %v434
        %452 = vst.msk [vmem:[%s188 + $0x58] sm:$0xff] %vm440, %v435
        %453 = vst.msk [vmem:[%s188 + $0x60] sm:$0xff] %vm440, %v436
        %454 = vst.msk [vmem:[%s188 + $0x68] sm:$0xff] %vm440, %v437
        %455 = vst.msk [vmem:[%s188 + $0x70] sm:$0xff] %vm440, %v438
        %456 = vst.msk [vmem:[%s188 + $0x78] sm:$0xff] %vm440, %v439
        %s457 = sand.u32 %s109, 1
        %s458 = scalar_lea.sflag [#allocation3], %s457
        %s459 = sand.u32 %s109, 1
        %s460 = smul.addr %s459, 128
        %s461 = scalar_lea.vmem [#allocation2], %s460
        // Predicated region
        $region33: #{conv2d_batchnorm_relu.3} parent=31 // pred_check
          %p462 = pneg %p119
        $region34: #{conv2d_batchnorm_relu.3} parent=31 // pred_check_branch
          %464 = sbr.rel (%p462) target = $region36
        $region35: #{conv2d_batchnorm_relu.3} parent=31 // pred_region
          %s465 = smul.u32 2, %s22
          %s467 = ssub.s32 2048, 2048
          %468 = vsyncadd %s458, %s467
          %s469 = smul.addr %s21, 16
          %s470 = sadd.s32 %s465, %s469
          %s471 = smul.addr %s470, 128
          %s472 = scalar_lea.hbm %s3, %s471
          %s473 = sshll.u32 %s461, 4
          %s474 = int_to_ptr.vmem [resolvable:$true] %s473
          %479 = dma.vmem_to_hbm [thread:$0]  %s474, 2048, %s472, %s458, 128, 128, 8
        $region36: #{conv2d_batchnorm_relu.3} parent=31 // pred_fallthru
          _
      $region32: #{conv2d_batchnorm_relu.3} parent=5 // pred_fallthru
        _
      %p480 = scmp.le.s32.totalorder 2, %s12
      // Predicated region
      $region37: #{conv2d_batchnorm_relu.3} parent=5 // pred_check
        %p481 = pneg %p480
      $region38: #{conv2d_batchnorm_relu.3} parent=5 // pred_check_branch
        %483 = sbr.rel (%p481) target = $region40
      $region39: #{conv2d_batchnorm_relu.3} parent=5 // pred_region
        %s484 = ssub.s32 %s12, 2
        // Predicated region
        $region41: #{conv2d_batchnorm_relu.3} parent=39 // pred_check
          %p485 = pneg %p125
        $region42: #{conv2d_batchnorm_relu.3} parent=39 // pred_check_branch
          %487 = sbr.rel (%p485) target = $region44
        $region43: #{conv2d_batchnorm_relu.3} parent=39 // pred_region
          %s488 = sand.u32 %s110, 1
          %s489 = scalar_lea.sflag [#allocation3], %s488
          %s490 = sand.u32 %s110, 1
          %s491 = smul.addr %s490, 128
          %s492 = scalar_lea.vmem [#allocation2], %s491
          %493 = dma.done %s489, 2048
        $region44: #{conv2d_batchnorm_relu.3} parent=39 // pred_fallthru
          _
      $region40: #{conv2d_batchnorm_relu.3} parent=5 // pred_fallthru
        _
    $region6: #{conv2d_batchnorm_relu.3} parent=1 // loop_footer
      %s16 = sadd.s32 1, %s12
    $region7: #{conv2d_batchnorm_relu.3} parent=1 // loop_footer_branch
      %11 = sbr.rel target = $region3
    $region8: #{conv2d_batchnorm_relu.3} parent=1 // loop_exit
      _
    %494 = vsyncpa [#allocation3], 1
    %s495 = scalar_lea.sflag [#allocation3], 1
    %496 = vsyncpa %s495, 1

// kernel: conv2d_batchnorm_relu.2
$region0: #{conv2d_batchnorm_relu.2}
  #allocation0 [shape = 'u32[]', space=smem, size = 0x4, offset = 0x4, fixed_abs, tag = 'smem constant byte address 0x4 - core index']
  #allocation1 [shape = 'u32[144,128]{1,0:T(1,128)}', space=vmem, size = 0x12000, scoped, tag = 'internal scratch']
  %s0 = inlined_call_operand.vmem [shape: bf16[2,4,384], index: 0, kind: input, shape index: {}]
  %s1 = inlined_call_operand.vmem [shape: bf16[9,8,4], index: 1, kind: input, shape index: {}]
  %s2 = inlined_call_operand.vmem [shape: f32[1,288], index: 2, kind: input, shape index: {}]
  %s3 = inlined_call_operand.vmem [shape: bf16[2,8,288], index: 3, kind: output, shape index: {0}]
  %s4 = inlined_call_operand.vmem [shape: f32[2,1,8,1], index: 4, kind: output, shape index: {1}]
  %s5 = inlined_call_operand.vmem [shape: f32[2,1,8,1], index: 5, kind: output, shape index: {2}]
  %6 = xla_tuple %s3, %s4, %s5
  %s7 = sld [smem:[#allocation0]]
  $region61: #{conv2d_batchnorm_relu.2} parent=0
    _
  %s9 = ssub.s32 1, %s7
  %s10 = scalar_select 0, %s9, %s7
  loop: start=0, step=1, limit=4
  $region2: #{conv2d_batchnorm_relu.2} parent=0 // loop_pre_header
    _
  $region3: #{conv2d_batchnorm_relu.2} parent=0 // loop_header
    %s12 = sphi 0, %s16
    %p13 = scmp.ge.s32.totalorder %s12, 4
    %s19 = sphi 0, %s31
    %s20 = sphi 0, %s27
    %s21 = sphi 0, %s19
    %s22 = sphi 0, %s20
    %s23 = sphi 0, %s21
    %s24 = sphi 0, %s22
    %s34 = sphi 0, %s36
    %s37 = sphi 0, %s34
    %s38 = sphi 0, %s37
    %s54 = sphi 0, %s38
    %s58 = sphi 0, %s58
    %s60 = sphi 0, %s58
    %s61 = sphi 0, %s60
    %s75 = sphi 0, %s61
    %s79 = sphi 0, %s79
    %s81 = sphi 0, %s79
    %s82 = sphi 0, %s81
    %s96 = sphi 0, %s82
    %s104 = sphi 0, %s106
    %s107 = sphi 0, %s104
    %s108 = sphi 0, %s107
    %s124 = sphi 0, %s108
    %s132 = sphi 0, %s134
    %s135 = sphi 0, %s132
    %s136 = sphi 0, %s135
    %s152 = sphi 0, %s136
    %s160 = sphi 0, %s162
    %s163 = sphi 0, %s160
    %s164 = sphi 0, %s163
    %s180 = sphi 0, %s164
  $region4: #{conv2d_batchnorm_relu.2} parent=0 // loop_header_branch
    %15 = sbr.rel (%p13) target = $region8
  $region5: #{conv2d_batchnorm_relu.2} parent=0 // loop_body
    %s17 = ssub.s32 %s12, 1
    %s18 = ssub.s32 %s12, 2
    %s25 = sadd.s32 1, %s20
    %p26 = scmp.ge.s32.totalorder %s25, 1
    %s27 = scalar_select %p26, 0, %s25
    %s28 = sadd.s32 1, %s19
    %s29 = scalar_select %p26, %s28, %s19
    %p30 = scmp.ge.s32.totalorder %s29, 2
    %s31 = scalar_select %p30, 0, %s29
    %s32 = ssub.s32 %s19, %s31
    %p33 = scmp.eq.s32.totalorder %s32, 0
    %s35 = sadd.s32 %s34, 1
    %s36 = scalar_select %p33, %s34, %s35
    %p39 = pneg %p33
    %p40 = scmp.eq.s32.totalorder %s12, 1
    %p41 = por %p39, %p40
    %p42 = scmp.ne.s32.totalorder %s34, %s37
    %p43 = scmp.eq.s32.totalorder %s12, 0
    %p44 = por %p42, %p43
    %p45 = scmp.ne.s32.totalorder %s34, %s37
    %p46 = scmp.eq.s32.totalorder %s17, 1
    %p47 = por %p45, %p46
    %p48 = scmp.ne.s32.totalorder %s37, %s38
    %p49 = scmp.eq.s32.totalorder %s17, 0
    %p50 = por %p48, %p49
    %p51 = scmp.ne.s32.totalorder %s37, %s38
    %p52 = scmp.eq.s32.totalorder %s18, 1
    %p53 = por %p51, %p52
    %p55 = scmp.ne.s32.totalorder %s38, %s54
    %p56 = scmp.eq.s32.totalorder %s18, 0
    %p57 = por %p55, %p56
    %s59 = sadd.s32 %s58, 1
    %p62 = scmp.eq.s32.totalorder %s12, 1
    %p63 = scmp.ne.s32.totalorder %s58, %s60
    %p64 = scmp.eq.s32.totalorder %s12, 0
    %p65 = por %p63, %p64
    %p66 = scmp.ne.s32.totalorder %s58, %s60
    %p67 = scmp.eq.s32.totalorder %s17, 1
    %p68 = por %p66, %p67
    %p69 = scmp.ne.s32.totalorder %s60, %s61
    %p70 = scmp.eq.s32.totalorder %s17, 0
    %p71 = por %p69, %p70
    %p72 = scmp.ne.s32.totalorder %s60, %s61
    %p73 = scmp.eq.s32.totalorder %s18, 1
    %p74 = por %p72, %p73
    %p76 = scmp.ne.s32.totalorder %s61, %s75
    %p77 = scmp.eq.s32.totalorder %s18, 0
    %p78 = por %p76, %p77
    %s80 = sadd.s32 %s79, 1
    %p83 = scmp.eq.s32.totalorder %s12, 1
    %p84 = scmp.ne.s32.totalorder %s79, %s81
    %p85 = scmp.eq.s32.totalorder %s12, 0
    %p86 = por %p84, %p85
    %p87 = scmp.ne.s32.totalorder %s79, %s81
    %p88 = scmp.eq.s32.totalorder %s17, 1
    %p89 = por %p87, %p88
    %p90 = scmp.ne.s32.totalorder %s81, %s82
    %p91 = scmp.eq.s32.totalorder %s17, 0
    %p92 = por %p90, %p91
    %p93 = scmp.ne.s32.totalorder %s81, %s82
    %p94 = scmp.eq.s32.totalorder %s18, 1
    %p95 = por %p93, %p94
    %p97 = scmp.ne.s32.totalorder %s82, %s96
    %p98 = scmp.eq.s32.totalorder %s18, 0
    %p99 = por %p97, %p98
    %s100 = ssub.s32 %s19, %s31
    %s101 = ssub.s32 %s20, %s27
    %s102 = sor.u32 %s100, %s101
    %p103 = scmp.eq.s32.totalorder %s102, 0
    %s105 = sadd.s32 %s104, 1
    %s106 = scalar_select %p103, %s104, %s105
    %p109 = pneg %p103
    %p110 = scmp.eq.s32.totalorder %s12, 1
    %p111 = por %p109, %p110
    %p112 = scmp.ne.s32.totalorder %s104, %s107
    %p113 = scmp.eq.s32.totalorder %s12, 0
    %p114 = por %p112, %p113
    %p115 = scmp.ne.s32.totalorder %s104, %s107
    %p116 = scmp.eq.s32.totalorder %s17, 1
    %p117 = por %p115, %p116
    %p118 = scmp.ne.s32.totalorder %s107, %s108
    %p119 = scmp.eq.s32.totalorder %s17, 0
    %p120 = por %p118, %p119
    %p121 = scmp.ne.s32.totalorder %s107, %s108
    %p122 = scmp.eq.s32.totalorder %s18, 1
    %p123 = por %p121, %p122
    %p125 = scmp.ne.s32.totalorder %s108, %s124
    %p126 = scmp.eq.s32.totalorder %s18, 0
    %p127 = por %p125, %p126
    %s128 = ssub.s32 %s19, %s31
    %s129 = ssub.s32 %s20, %s27
    %s130 = sor.u32 %s128, %s129
    %p131 = scmp.eq.s32.totalorder %s130, 0
    %s133 = sadd.s32 %s132, 1
    %s134 = scalar_select %p131, %s132, %s133
    %p137 = pneg %p131
    %p138 = scmp.eq.s32.totalorder %s12, 1
    %p139 = por %p137, %p138
    %p140 = scmp.ne.s32.totalorder %s132, %s135
    %p141 = scmp.eq.s32.totalorder %s12, 0
    %p142 = por %p140, %p141
    %p143 = scmp.ne.s32.totalorder %s132, %s135
    %p144 = scmp.eq.s32.totalorder %s17, 1
    %p145 = por %p143, %p144
    %p146 = scmp.ne.s32.totalorder %s135, %s136
    %p147 = scmp.eq.s32.totalorder %s17, 0
    %p148 = por %p146, %p147
    %p149 = scmp.ne.s32.totalorder %s135, %s136
    %p150 = scmp.eq.s32.totalorder %s18, 1
    %p151 = por %p149, %p150
    %p153 = scmp.ne.s32.totalorder %s136, %s152
    %p154 = scmp.eq.s32.totalorder %s18, 0
    %p155 = por %p153, %p154
    %s156 = ssub.s32 %s19, %s31
    %s157 = ssub.s32 %s20, %s27
    %s158 = sor.u32 %s156, %s157
    %p159 = scmp.eq.s32.totalorder %s158, 0
    %s161 = sadd.s32 %s160, 1
    %s162 = scalar_select %p159, %s160, %s161
    %p165 = pneg %p159
    %p166 = scmp.eq.s32.totalorder %s12, 1
    %p167 = por %p165, %p166
    %p168 = scmp.ne.s32.totalorder %s160, %s163
    %p169 = scmp.eq.s32.totalorder %s12, 0
    %p170 = por %p168, %p169
    %p171 = scmp.ne.s32.totalorder %s160, %s163
    %p172 = scmp.eq.s32.totalorder %s17, 1
    %p173 = por %p171, %p172
    %p174 = scmp.ne.s32.totalorder %s163, %s164
    %p175 = scmp.eq.s32.totalorder %s17, 0
    %p176 = por %p174, %p175
    %p177 = scmp.ne.s32.totalorder %s163, %s164
    %p178 = scmp.eq.s32.totalorder %s18, 1
    %p179 = por %p177, %p178
    %p181 = scmp.ne.s32.totalorder %s164, %s180
    %p182 = scmp.eq.s32.totalorder %s18, 0
    %p183 = por %p181, %p182
    %p184 = scmp.le.s32.totalorder 1, %s12
    %p185 = scmp.lt.s32.totalorder %s12, 3
    %p186 = pnand %p184, %p185
    %p187 = pneg %p186
    // Predicated region
    $region9: #{conv2d_batchnorm_relu.2} parent=5 // pred_check
      _
    $region10: #{conv2d_batchnorm_relu.2} parent=5 // pred_check_branch
      %189 = sbr.rel (%p186) target = $region12
    $region11: #{conv2d_batchnorm_relu.2} parent=5 // pred_region
      %s190 = ssub.s32 %s12, 1
      // Predicated region
      $region13: #{conv2d_batchnorm_relu.2} parent=11 // pred_check
        %p191 = pneg %p71
      $region14: #{conv2d_batchnorm_relu.2} parent=11 // pred_check_branch
        %193 = sbr.rel (%p191) target = $region16
      $region15: #{conv2d_batchnorm_relu.2} parent=11 // pred_region
        _
      $region16: #{conv2d_batchnorm_relu.2} parent=11 // pred_fallthru
        _
      // Predicated region
      $region17: #{conv2d_batchnorm_relu.2} parent=11 // pred_check
        %p194 = pneg %p92
      $region18: #{conv2d_batchnorm_relu.2} parent=11 // pred_check_branch
        %196 = sbr.rel (%p194) target = $region20
      $region19: #{conv2d_batchnorm_relu.2} parent=11 // pred_region
        _
      $region20: #{conv2d_batchnorm_relu.2} parent=11 // pred_fallthru
        _
    $region12: #{conv2d_batchnorm_relu.2} parent=5 // pred_fallthru
      _
    %p197 = scmp.lt.s32.totalorder %s12, 2
    // Predicated region
    $region21: #{conv2d_batchnorm_relu.2} parent=5 // pred_check
      %p198 = pneg %p197
    $region22: #{conv2d_batchnorm_relu.2} parent=5 // pred_check_branch
      %200 = sbr.rel (%p198) target = $region24
    $region23: #{conv2d_batchnorm_relu.2} parent=5 // pred_region
      // Predicated region
      $region25: #{conv2d_batchnorm_relu.2} parent=23 // pred_check
        %p201 = pneg %p44
      $region26: #{conv2d_batchnorm_relu.2} parent=23 // pred_check_branch
        %203 = sbr.rel (%p201) target = $region28
      $region27: #{conv2d_batchnorm_relu.2} parent=23 // pred_region
        %p204 = scmp.lt.s32.totalorder %s19, 1
        %s205 = scalar_select %p204, %s19, 1
        %s206 = smul.addr %s205, 3
        %s207 = smul.addr %s206, 2
        %s208 = scalar_lea.vmem %s0, %s207
      $region28: #{conv2d_batchnorm_relu.2} parent=23 // pred_fallthru
        _
    $region24: #{conv2d_batchnorm_relu.2} parent=5 // pred_fallthru
      _
    %p209 = scmp.le.s32.totalorder 1, %s12
    %p210 = scmp.lt.s32.totalorder %s12, 3
    %p211 = pnand %p209, %p210
    %p212 = pneg %p211
    // Predicated region
    $region29: #{conv2d_batchnorm_relu.2} parent=5 // pred_check
      _
    $region30: #{conv2d_batchnorm_relu.2} parent=5 // pred_check_branch
      %214 = sbr.rel (%p211) target = $region32
    $region31: #{conv2d_batchnorm_relu.2} parent=5 // pred_region
      %s215 = ssub.s32 %s12, 1
      %p216 = scmp.lt.s32.totalorder %s21, 1
      %s217 = scalar_select %p216, %s21, 1
      %s218 = smul.addr %s217, 3
      %s219 = smul.addr %s218, 2
      %s220 = scalar_lea.vmem %s0, %s219
      %p221 = pneg %p50
      %p222 = pneg %p47
      %p223 = pneg %p71
      %p224 = pneg %p68
      %p225 = pneg %p92
      %p226 = pneg %p89
      %p227 = pneg %p120
      %p228 = pneg %p117
      %s229 = smul.u32 3, %s22
      %p230 = scmp.lt.s32.totalorder %s21, 1
      %s231 = scalar_select %p230, %s21, 1
      %p232 = scmp.lt.s32.totalorder %s229, 2
      %s233 = scalar_select %p232, %s229, 2
      %s234 = smul.addr %s231, 3
      %s235 = sadd.s32 %s233, %s234
      %s236 = smul.addr %s235, 4
      %s237 = scalar_lea.vmem %s3, %s236
      %p238 = pneg %p148
      %p239 = pneg %p145
      %p240 = scmp.lt.s32.totalorder %s21, 1
      %s241 = scalar_select %p240, %s21, 1
      %p242 = scmp.lt.s32.totalorder %s22, 0
      %s243 = scalar_select %p242, %s22, 0
      %s244 = sadd.s32 %s243, %s241
      %s245 = smul.addr %s244, 8
      %s246 = scalar_lea.vmem %s4, %s245
      %p247 = pneg %p176
      %p248 = pneg %p173
      %p249 = scmp.lt.s32.totalorder %s21, 1
      %s250 = scalar_select %p249, %s21, 1
      %p251 = scmp.lt.s32.totalorder %s22, 0
      %s252 = scalar_select %p251, %s22, 0
      %s253 = sadd.s32 %s252, %s250
      %s254 = smul.addr %s253, 8
      %s255 = scalar_lea.vmem %s5, %s254
      %p256 = scmp.lt.s32.totalorder %s21, 1
      %s257 = scalar_select %p256, %s21, 1
      %s258 = smul.addr %s257, 3
      %s259 = smul.addr %s258, 2
      %s260 = scalar_lea.vmem %s0, %s259
      %s261 = smul.u32 3, %s22
      %p262 = scmp.lt.s32.totalorder %s21, 1
      %s263 = scalar_select %p262, %s21, 1
      %p264 = scmp.lt.s32.totalorder %s261, 2
      %s265 = scalar_select %p264, %s261, 2
      %s266 = smul.addr %s263, 3
      %s267 = sadd.s32 %s265, %s266
      %s268 = smul.addr %s267, 4
      %s269 = scalar_lea.vmem %s3, %s268
      %s270 = smul.u32 3, %s22
      %p271 = scmp.lt.s32.totalorder %s21, 1
      %s272 = scalar_select %p271, %s21, 1
      %p273 = scmp.lt.s32.totalorder %s22, 0
      %s274 = scalar_select %p273, %s22, 0
      %s275 = sadd.s32 %s274, %s272
      %s276 = smul.addr %s275, 8
      %s277 = scalar_lea.vmem %s4, %s276
      %p278 = scmp.lt.s32.totalorder %s21, 1
      %s279 = scalar_select %p278, %s21, 1
      %p280 = scmp.lt.s32.totalorder %s22, 0
      %s281 = scalar_select %p280, %s22, 0
      %s282 = sadd.s32 %s281, %s279
      %s283 = smul.addr %s282, 8
      %s284 = scalar_lea.vmem %s5, %s283
      %v286 = vld [vmem:[%s260] sm:$0x3f]
      %v287 = vld [vmem:[%s1] sm:$0xf]
      %s288 = scalar_lea.vmem %s1, 4
      %v289 = vld [vmem:[%s288] sm:$0xf]
      %v291 = vcombine.high %v286, %v286
      %v293 = vunpack.c.l.s4 1983009808
      %v294 = vunpack.c.0.s8 %v293
      %v295 = vlaneseq
      %v296 = vshrl.u32 %v295, 7
      %v297 = vsub.s32 %v294, %v296
      %v298 = vrot.slane %v286, %v297
      %v300 = vunpack.c.l.s4 1983009808
      %v301 = vunpack.c.0.s8 %v300
      %v302 = vlaneseq
      %v303 = vshrl.u32 %v302, 7
      %v304 = vsub.s32 %v301, %v303
      %v305 = vrot.slane %v291, %v304
      %v306 = vcombine.high %v298, %v298
      %307 = vrot.lane.b32.xlu0 %v298, 127
      %v308 = vpop.permute.xlu0 %307
      %309 = vrot.lane.b32.xlu0 %v306, 127
      %v310 = vpop.permute.xlu0 %309
      %311 = vrot.lane.b32.xlu0 %v305, 127
      %v312 = vpop.permute.xlu0 %311
      %vm313 = vcmask 1039360
      %v314 = vsel %vm313, %v308, %v310
      %v315 = vsel %vm313, %v310, %v312
      %vm316 = vcmask 31744
      %v318 = vsel %vm316, %v289, 0
      %vm320 = vcmask 1041408
      %v322 = vsel %vm320, %v314, 0
      %v325 = vsel %vm320, %v315, 0
      %v328 = vsel %vm320, %v312, 0
      %330 = vmatprep.subr.bf16.mxu0 %v325
      %331 = vmatpush1.bf16.msra.mxu0 %v322
      %332 = vmatprep.subr.bf16.mxu0 0
      %333 = vmatpush1.bf16.msra.mxu0 0
      %334 = vmatprep.subr.bf16.mxu0 0
      %335 = vmatpush1.bf16.msra.mxu0 0
      %336 = vmatprep.subr.bf16.mxu0 0
      %337 = vmatpush1.bf16.msra.mxu0 0
      %338 = vmatprep.subr.bf16.mxu0 0
      %339 = vmatpush1.bf16.msra.mxu0 0
      %340 = vmatprep.subr.bf16.mxu0 0
      %341 = vmatpush1.bf16.msra.mxu0 0
      %342 = vmatprep.subr.bf16.mxu0 0
      %343 = vmatpush1.bf16.msra.mxu0 0
      %344 = vmatprep.subr.bf16.mxu0 0
      %345 = vmatpush1.bf16.msra.mxu0 0
      %346 = vmatprep.subr.bf16.mxu0 0
      %347 = vmatpush1.bf16.msra.mxu0 0
      %348 = vmatprep.subr.bf16.mxu0 0
      %349 = vmatpush1.bf16.msra.mxu0 0
      %350 = vmatprep.subr.bf16.mxu0 0
      %351 = vmatpush1.bf16.msra.mxu0 0
      %352 = vmatprep.subr.bf16.mxu0 0
      %353 = vmatpush1.bf16.msra.mxu0 0
      %354 = vmatprep.subr.bf16.mxu0 0
      %355 = vmatpush1.bf16.msra.mxu0 0
      %356 = vmatprep.subr.bf16.mxu0 0
      %357 = vmatpush1.bf16.msra.mxu0 0
      %358 = vmatprep.subr.bf16.mxu0 0
      %359 = vmatpush1.bf16.msra.mxu0 0
      %360 = vmatprep.subr.bf16.mxu0 0
      %361 = vmatpush1.bf16.msra.mxu0 0
      %362 = vmatprep.mubr.bf16.mxu0 0
      %363 = vmatmul.mubr.bf16.gmra.mrb[0].mxu0 %v318
      %v364 = vpop.f32.mrb[0].mxu0
      %v365 = vadd.f32 0.0, %v364
      %v366 = vpop.f32.mrb[0].mxu0
      %v367 = vadd.f32 0.0, %v366
      %v368 = vpop.f32.mrb[0].mxu0
      %v369 = vpop.f32.mrb[0].mxu0
      %370 = vdwg.mxu0
      %371 = vmatprep.subr.bf16.mxu0 0
      %372 = vmatpush1.bf16.msra.mxu0 %v328
      %373 = vmatprep.subr.bf16.mxu0 0
      %374 = vmatpush1.bf16.msra.mxu0 0
      %375 = vmatprep.subr.bf16.mxu0 0
      %376 = vmatpush1.bf16.msra.mxu0 0
      %377 = vmatprep.subr.bf16.mxu0 0
      %378 = vmatpush1.bf16.msra.mxu0 0
      %379 = vmatprep.subr.bf16.mxu0 0
      %380 = vmatpush1.bf16.msra.mxu0 0
      %381 = vmatprep.subr.bf16.mxu0 0
      %382 = vmatpush1.bf16.msra.mxu0 0
      %383 = vmatprep.subr.bf16.mxu0 0
      %384 = vmatpush1.bf16.msra.mxu0 0
      %385 = vmatprep.subr.bf16.mxu0 0
      %386 = vmatpush1.bf16.msra.mxu0 0
      %387 = vmatprep.subr.bf16.mxu0 0
      %388 = vmatpush1.bf16.msra.mxu0 0
      %389 = vmatprep.subr.bf16.mxu0 0
      %390 = vmatpush1.bf16.msra.mxu0 0
      %391 = vmatprep.subr.bf16.mxu0 0
      %392 = vmatpush1.bf16.msra.mxu0 0
      %393 = vmatprep.subr.bf16.mxu0 0
      %394 = vmatpush1.bf16.msra.mxu0 0
      %395 = vmatprep.subr.bf16.mxu0 0
      %396 = vmatpush1.bf16.msra.mxu0 0
      %397 = vmatprep.subr.bf16.mxu0 0
      %398 = vmatpush1.bf16.msra.mxu0 0
      %399 = vmatprep.subr.bf16.mxu0 0
      %400 = vmatpush1.bf16.msra.mxu0 0
      %401 = vmatprep.subr.bf16.mxu0 0
      %402 = vmatpush1.bf16.msra.mxu0 0
      %403 = vmatprep.mubr.bf16.mxu0 0
      %404 = vmatmul.mubr.bf16.gmra.mrb[0].mxu0 %v318
      %v405 = vpop.f32.mrb[0].mxu0
      %v406 = vadd.f32 0.0, %v405
      %v407 = vpop.f32.mrb[0].mxu0
      %v408 = vpop.f32.mrb[0].mxu0
      %v409 = vpop.f32.mrb[0].mxu0
      %410 = vdwg.mxu0
      %v412 = vsel %vm316, %v287, 0
      %v415 = vsel %vm320, %v298, 0
      %v418 = vsel %vm320, %v306, 0
      %v421 = vsel %vm320, %v305, 0
      %423 = vmatprep.subr.bf16.mxu0 %v418
      %424 = vmatpush1.bf16.msra.mxu0 %v415
      %425 = vmatprep.subr.bf16.mxu0 0
      %426 = vmatpush1.bf16.msra.mxu0 0
      %427 = vmatprep.subr.bf16.mxu0 0
      %428 = vmatpush1.bf16.msra.mxu0 0
      %429 = vmatprep.subr.bf16.mxu0 0
      %430 = vmatpush1.bf16.msra.mxu0 0
      %431 = vmatprep.subr.bf16.mxu0 0
      %432 = vmatpush1.bf16.msra.mxu0 0
      %433 = vmatprep.subr.bf16.mxu0 0
      %434 = vmatpush1.bf16.msra.mxu0 0
      %435 = vmatprep.subr.bf16.mxu0 0
      %436 = vmatpush1.bf16.msra.mxu0 0
      %437 = vmatprep.subr.bf16.mxu0 0
      %438 = vmatpush1.bf16.msra.mxu0 0
      %439 = vmatprep.subr.bf16.mxu0 0
      %440 = vmatpush1.bf16.msra.mxu0 0
      %441 = vmatprep.subr.bf16.mxu0 0
      %442 = vmatpush1.bf16.msra.mxu0 0
      %443 = vmatprep.subr.bf16.mxu0 0
      %444 = vmatpush1.bf16.msra.mxu0 0
      %445 = vmatprep.subr.bf16.mxu0 0
      %446 = vmatpush1.bf16.msra.mxu0 0
      %447 = vmatprep.subr.bf16.mxu0 0
      %448 = vmatpush1.bf16.msra.mxu0 0
      %449 = vmatprep.subr.bf16.mxu0 0
      %450 = vmatpush1.bf16.msra.mxu0 0
      %451 = vmatprep.subr.bf16.mxu0 0
      %452 = vmatpush1.bf16.msra.mxu0 0
      %453 = vmatprep.subr.bf16.mxu0 0
      %454 = vmatpush1.bf16.msra.mxu0 0
      %455 = vmatprep.mubr.bf16.mxu0 0
      %456 = vmatmul.mubr.bf16.gmra.mrb[0].mxu0 %v412
      %v457 = vpop.f32.mrb[0].mxu0
      %v458 = vadd.f32 %v365, %v457
      %v459 = vpop.f32.mrb[0].mxu0
      %v460 = vadd.f32 %v367, %v459
      %v461 = vpop.f32.mrb[0].mxu0
      %v462 = vpop.f32.mrb[0].mxu0
      %463 = vdwg.mxu0
      %464 = vmatprep.subr.bf16.mxu0 0
      %465 = vmatpush1.bf16.msra.mxu0 %v421
      %466 = vmatprep.subr.bf16.mxu0 0
      %467 = vmatpush1.bf16.msra.mxu0 0
      %468 = vmatprep.subr.bf16.mxu0 0
      %469 = vmatpush1.bf16.msra.mxu0 0
      %470 = vmatprep.subr.bf16.mxu0 0
      %471 = vmatpush1.bf16.msra.mxu0 0
      %472 = vmatprep.subr.bf16.mxu0 0
      %473 = vmatpush1.bf16.msra.mxu0 0
      %474 = vmatprep.subr.bf16.mxu0 0
      %475 = vmatpush1.bf16.msra.mxu0 0
      %476 = vmatprep.subr.bf16.mxu0 0
      %477 = vmatpush1.bf16.msra.mxu0 0
      %478 = vmatprep.subr.bf16.mxu0 0
      %479 = vmatpush1.bf16.msra.mxu0 0
      %480 = vmatprep.subr.bf16.mxu0 0
      %481 = vmatpush1.bf16.msra.mxu0 0
      %482 = vmatprep.subr.bf16.mxu0 0
      %483 = vmatpush1.bf16.msra.mxu0 0
      %484 = vmatprep.subr.bf16.mxu0 0
      %485 = vmatpush1.bf16.msra.mxu0 0
      %486 = vmatprep.subr.bf16.mxu0 0
      %487 = vmatpush1.bf16.msra.mxu0 0
      %488 = vmatprep.subr.bf16.mxu0 0
      %489 = vmatpush1.bf16.msra.mxu0 0
      %490 = vmatprep.subr.bf16.mxu0 0
      %491 = vmatpush1.bf16.msra.mxu0 0
      %492 = vmatprep.subr.bf16.mxu0 0
      %493 = vmatpush1.bf16.msra.mxu0 0
      %494 = vmatprep.subr.bf16.mxu0 0
      %495 = vmatpush1.bf16.msra.mxu0 0
      %496 = vmatprep.mubr.bf16.mxu0 0
      %497 = vmatmul.mubr.bf16.gmra.mrb[0].mxu0 %v412
      %v498 = vpop.f32.mrb[0].mxu0
      %v499 = vadd.f32 %v406, %v498
      %v500 = vpop.f32.mrb[0].mxu0
      %v501 = vpop.f32.mrb[0].mxu0
      %v502 = vpop.f32.mrb[0].mxu0
      %503 = vdwg.mxu0
      %v504 = vld [vmem:[%s260] sm:$0x3f]
      %s505 = scalar_lea.vmem %s1, 8
      %v506 = vld [vmem:[%s505] sm:$0xf]
      %v508 = vcombine.high %v504, %v504
      %v510 = vunpack.c.l.s4 1983009808
      %v511 = vunpack.c.0.s8 %v510
      %v512 = vlaneseq
      %v513 = vshrl.u32 %v512, 7
      %v514 = vsub.s32 %v511, %v513
      %v515 = vrot.slane %v504, %v514
      %v517 = vunpack.c.l.s4 1983009808
      %v518 = vunpack.c.0.s8 %v517
      %v519 = vlaneseq
      %v520 = vshrl.u32 %v519, 7
      %v521 = vsub.s32 %v518, %v520
      %v522 = vrot.slane %v508, %v521
      %v523 = vcombine.high %v515, %v515
      %524 = vrot.lane.b32.xlu0 %v515, 126
      %v525 = vpop.permute.xlu0 %524
      %526 = vrot.lane.b32.xlu0 %v523, 126
      %v527 = vpop.permute.xlu0 %526
      %528 = vrot.lane.b32.xlu0 %v522, 126
      %v529 = vpop.permute.xlu0 %528
      %vm530 = vcmask 1031168
      %v531 = vsel %vm530, %v525, %v527
      %v532 = vsel %vm530, %v527, %v529
      %v534 = vsel %vm316, %v506, 0
      %v537 = vsel %vm320, %v531, 0
      %v540 = vsel %vm320, %v532, 0
      %v543 = vsel %vm320, %v529, 0
      %545 = vmatprep.subr.bf16.mxu0 %v540
      %546 = vmatpush1.bf16.msra.mxu0 %v537
      %547 = vmatprep.subr.bf16.mxu0 0
      %548 = vmatpush1.bf16.msra.mxu0 0
      %549 = vmatprep.subr.bf16.mxu0 0
      %550 = vmatpush1.bf16.msra.mxu0 0
      %551 = vmatprep.subr.bf16.mxu0 0
      %552 = vmatpush1.bf16.msra.mxu0 0
      %553 = vmatprep.subr.bf16.mxu0 0
      %554 = vmatpush1.bf16.msra.mxu0 0
      %555 = vmatprep.subr.bf16.mxu0 0
      %556 = vmatpush1.bf16.msra.mxu0 0
      %557 = vmatprep.subr.bf16.mxu0 0
      %558 = vmatpush1.bf16.msra.mxu0 0
      %559 = vmatprep.subr.bf16.mxu0 0
      %560 = vmatpush1.bf16.msra.mxu0 0
      %561 = vmatprep.subr.bf16.mxu0 0
      %562 = vmatpush1.bf16.msra.mxu0 0
      %563 = vmatprep.subr.bf16.mxu0 0
      %564 = vmatpush1.bf16.msra.mxu0 0
      %565 = vmatprep.subr.bf16.mxu0 0
      %566 = vmatpush1.bf16.msra.mxu0 0
      %567 = vmatprep.subr.bf16.mxu0 0
      %568 = vmatpush1.bf16.msra.mxu0 0
      %569 = vmatprep.subr.bf16.mxu0 0
      %570 = vmatpush1.bf16.msra.mxu0 0
      %571 = vmatprep.subr.bf16.mxu0 0
      %572 = vmatpush1.bf16.msra.mxu0 0
      %573 = vmatprep.subr.bf16.mxu0 0
      %574 = vmatpush1.bf16.msra.mxu0 0
      %575 = vmatprep.subr.bf16.mxu0 0
      %576 = vmatpush1.bf16.msra.mxu0 0
      %577 = vmatprep.mubr.bf16.mxu0 0
      %578 = vmatmul.mubr.bf16.gmra.mrb[0].mxu0 %v534
      %v579 = vpop.f32.mrb[0].mxu0
      %v580 = vadd.f32 0.0, %v579
      %v581 = vpop.f32.mrb[0].mxu0
      %v582 = vadd.f32 0.0, %v581
      %v583 = vpop.f32.mrb[0].mxu0
      %v584 = vpop.f32.mrb[0].mxu0
      %585 = vdwg.mxu0
      %586 = vmatprep.subr.bf16.mxu0 0
      %587 = vmatpush1.bf16.msra.mxu0 %v543
      %588 = vmatprep.subr.bf16.mxu0 0
      %589 = vmatpush1.bf16.msra.mxu0 0
      %590 = vmatprep.subr.bf16.mxu0 0
      %591 = vmatpush1.bf16.msra.mxu0 0
      %592 = vmatprep.subr.bf16.mxu0 0
      %593 = vmatpush1.bf16.msra.mxu0 0
      %594 = vmatprep.subr.bf16.mxu0 0
      %595 = vmatpush1.bf16.msra.mxu0 0
      %596 = vmatprep.subr.bf16.mxu0 0
      %597 = vmatpush1.bf16.msra.mxu0 0
      %598 = vmatprep.subr.bf16.mxu0 0
      %599 = vmatpush1.bf16.msra.mxu0 0
      %600 = vmatprep.subr.bf16.mxu0 0
      %601 = vmatpush1.bf16.msra.mxu0 0
      %602 = vmatprep.subr.bf16.mxu0 0
      %603 = vmatpush1.bf16.msra.mxu0 0
      %604 = vmatprep.subr.bf16.mxu0 0
      %605 = vmatpush1.bf16.msra.mxu0 0
      %606 = vmatprep.subr.bf16.mxu0 0
      %607 = vmatpush1.bf16.msra.mxu0 0
      %608 = vmatprep.subr.bf16.mxu0 0
      %609 = vmatpush1.bf16.msra.mxu0 0
      %610 = vmatprep.subr.bf16.mxu0 0
      %611 = vmatpush1.bf16.msra.mxu0 0
      %612 = vmatprep.subr.bf16.mxu0 0
      %613 = vmatpush1.bf16.msra.mxu0 0
      %614 = vmatprep.subr.bf16.mxu0 0
      %615 = vmatpush1.bf16.msra.mxu0 0
      %616 = vmatprep.subr.bf16.mxu0 0
      %617 = vmatpush1.bf16.msra.mxu0 0
      %618 = vmatprep.mubr.bf16.mxu0 0
      %619 = vmatmul.mubr.bf16.gmra.mrb[0].mxu0 %v534
      %v620 = vpop.f32.mrb[0].mxu0
      %v621 = vadd.f32 0.0, %v620
      %v622 = vpop.f32.mrb[0].mxu0
      %v623 = vpop.f32.mrb[0].mxu0
      %v624 = vpop.f32.mrb[0].mxu0
      %625 = vdwg.mxu0
      %v626 = vadd.f32 %v458, %v580
      %v627 = vadd.f32 %v460, %v582
      %v628 = vadd.f32 %v499, %v621
      %v629 = vld [vmem:[%s260] sm:$0x3f]
      %s630 = scalar_lea.vmem %s1, 12
      %v631 = vld [vmem:[%s630] sm:$0xf]
      %v633 = vcombine.high %v629, %v629
      %v635 = vunpack.c.l.s4 1983009808
      %v636 = vunpack.c.0.s8 %v635
      %v637 = vlaneseq
      %v638 = vshrl.u32 %v637, 7
      %v639 = vsub.s32 %v636, %v638
      %v640 = vrot.slane %v629, %v639
      %v642 = vunpack.c.l.s4 1983009808
      %v643 = vunpack.c.0.s8 %v642
      %v644 = vlaneseq
      %v645 = vshrl.u32 %v644, 7
      %v646 = vsub.s32 %v643, %v645
      %v647 = vrot.slane %v633, %v646
      %v648 = vcombine.high %v640, %v640
      %649 = vrot.lane.b32.xlu0 %v640, 110
      %v650 = vpop.permute.xlu0 %649
      %651 = vrot.lane.b32.xlu0 %v648, 110
      %v652 = vpop.permute.xlu0 %651
      %653 = vrot.lane.b32.xlu0 %v647, 110
      %v654 = vpop.permute.xlu0 %653
      %vm655 = vcmask 900096
      %v656 = vsel %vm655, %v650, %v652
      %v657 = vsel %vm655, %v652, %v654
      %v659 = vsel %vm316, %v631, 0
      %v662 = vsel %vm320, %v656, 0
      %v665 = vsel %vm320, %v657, 0
      %v668 = vsel %vm320, %v654, 0
      %670 = vmatprep.subr.bf16.mxu0 %v665
      %671 = vmatpush1.bf16.msra.mxu0 %v662
      %672 = vmatprep.subr.bf16.mxu0 0
      %673 = vmatpush1.bf16.msra.mxu0 0
      %674 = vmatprep.subr.bf16.mxu0 0
      %675 = vmatpush1.bf16.msra.mxu0 0
      %676 = vmatprep.subr.bf16.mxu0 0
      %677 = vmatpush1.bf16.msra.mxu0 0
      %678 = vmatprep.subr.bf16.mxu0 0
      %679 = vmatpush1.bf16.msra.mxu0 0
      %680 = vmatprep.subr.bf16.mxu0 0
      %681 = vmatpush1.bf16.msra.mxu0 0
      %682 = vmatprep.subr.bf16.mxu0 0
      %683 = vmatpush1.bf16.msra.mxu0 0
      %684 = vmatprep.subr.bf16.mxu0 0
      %685 = vmatpush1.bf16.msra.mxu0 0
      %686 = vmatprep.subr.bf16.mxu0 0
      %687 = vmatpush1.bf16.msra.mxu0 0
      %688 = vmatprep.subr.bf16.mxu0 0
      %689 = vmatpush1.bf16.msra.mxu0 0
      %690 = vmatprep.subr.bf16.mxu0 0
      %691 = vmatpush1.bf16.msra.mxu0 0
      %692 = vmatprep.subr.bf16.mxu0 0
      %693 = vmatpush1.bf16.msra.mxu0 0
      %694 = vmatprep.subr.bf16.mxu0 0
      %695 = vmatpush1.bf16.msra.mxu0 0
      %696 = vmatprep.subr.bf16.mxu0 0
      %697 = vmatpush1.bf16.msra.mxu0 0
      %698 = vmatprep.subr.bf16.mxu0 0
      %699 = vmatpush1.bf16.msra.mxu0 0
      %700 = vmatprep.subr.bf16.mxu0 0
      %701 = vmatpush1.bf16.msra.mxu0 0
      %702 = vmatprep.mubr.bf16.mxu0 0
      %703 = vmatmul.mubr.bf16.gmra.mrb[0].mxu0 %v659
      %v704 = vpop.f32.mrb[0].mxu0
      %v705 = vadd.f32 0.0, %v704
      %v706 = vpop.f32.mrb[0].mxu0
      %v707 = vadd.f32 0.0, %v706
      %v708 = vpop.f32.mrb[0].mxu0
      %v709 = vpop.f32.mrb[0].mxu0
      %710 = vdwg.mxu0
      %711 = vmatprep.subr.bf16.mxu0 0
      %712 = vmatpush1.bf16.msra.mxu0 %v668
      %713 = vmatprep.subr.bf16.mxu0 0
      %714 = vmatpush1.bf16.msra.mxu0 0
      %715 = vmatprep.subr.bf16.mxu0 0
      %716 = vmatpush1.bf16.msra.mxu0 0
      %717 = vmatprep.subr.bf16.mxu0 0
      %718 = vmatpush1.bf16.msra.mxu0 0
      %719 = vmatprep.subr.bf16.mxu0 0
      %720 = vmatpush1.bf16.msra.mxu0 0
      %721 = vmatprep.subr.bf16.mxu0 0
      %722 = vmatpush1.bf16.msra.mxu0 0
      %723 = vmatprep.subr.bf16.mxu0 0
      %724 = vmatpush1.bf16.msra.mxu0 0
      %725 = vmatprep.subr.bf16.mxu0 0
      %726 = vmatpush1.bf16.msra.mxu0 0
      %727 = vmatprep.subr.bf16.mxu0 0
      %728 = vmatpush1.bf16.msra.mxu0 0
      %729 = vmatprep.subr.bf16.mxu0 0
      %730 = vmatpush1.bf16.msra.mxu0 0
      %731 = vmatprep.subr.bf16.mxu0 0
      %732 = vmatpush1.bf16.msra.mxu0 0
      %733 = vmatprep.subr.bf16.mxu0 0
      %734 = vmatpush1.bf16.msra.mxu0 0
      %735 = vmatprep.subr.bf16.mxu0 0
      %736 = vmatpush1.bf16.msra.mxu0 0
      %737 = vmatprep.subr.bf16.mxu0 0
      %738 = vmatpush1.bf16.msra.mxu0 0
      %739 = vmatprep.subr.bf16.mxu0 0
      %740 = vmatpush1.bf16.msra.mxu0 0
      %741 = vmatprep.subr.bf16.mxu0 0
      %742 = vmatpush1.bf16.msra.mxu0 0
      %743 = vmatprep.mubr.bf16.mxu0 0
      %744 = vmatmul.mubr.bf16.gmra.mrb[0].mxu0 %v659
      %v745 = vpop.f32.mrb[0].mxu0
      %v746 = vadd.f32 0.0, %v745
      %v747 = vpop.f32.mrb[0].mxu0
      %v748 = vpop.f32.mrb[0].mxu0
      %v749 = vpop.f32.mrb[0].mxu0
      %750 = vdwg.mxu0
      %v751 = vadd.f32 %v626, %v705
      %v752 = vadd.f32 %v627, %v707
      %v753 = vadd.f32 %v628, %v746
      %v754 = vld [vmem:[%s260] sm:$0x3f]
      %s755 = scalar_lea.vmem %s1, 16
      %v756 = vld [vmem:[%s755] sm:$0xf]
      %v758 = vcombine.high %v754, %v754
      %v760 = vunpack.c.l.s4 1983009808
      %v761 = vunpack.c.0.s8 %v760
      %v762 = vlaneseq
      %v763 = vshrl.u32 %v762, 7
      %v764 = vsub.s32 %v761, %v763
      %v765 = vrot.slane %v754, %v764
      %v767 = vunpack.c.l.s4 1983009808
      %v768 = vunpack.c.0.s8 %v767
      %v769 = vlaneseq
      %v770 = vshrl.u32 %v769, 7
      %v771 = vsub.s32 %v768, %v770
      %v772 = vrot.slane %v758, %v771
      %v773 = vcombine.high %v765, %v765
      %774 = vrot.lane.b32.xlu0 %v765, 109
      %v775 = vpop.permute.xlu0 %774
      %776 = vrot.lane.b32.xlu0 %v773, 109
      %v777 = vpop.permute.xlu0 %776
      %778 = vrot.lane.b32.xlu0 %v772, 109
      %v779 = vpop.permute.xlu0 %778
      %vm780 = vcmask 891904
      %v781 = vsel %vm780, %v775, %v777
      %v782 = vsel %vm780, %v777, %v779
      %v784 = vsel %vm316, %v756, 0
      %v787 = vsel %vm320, %v781, 0
      %v790 = vsel %vm320, %v782, 0
      %v793 = vsel %vm320, %v779, 0
      %795 = vmatprep.subr.bf16.mxu0 %v790
      %796 = vmatpush1.bf16.msra.mxu0 %v787
      %797 = vmatprep.subr.bf16.mxu0 0
      %798 = vmatpush1.bf16.msra.mxu0 0
      %799 = vmatprep.subr.bf16.mxu0 0
      %800 = vmatpush1.bf16.msra.mxu0 0
      %801 = vmatprep.subr.bf16.mxu0 0
      %802 = vmatpush1.bf16.msra.mxu0 0
      %803 = vmatprep.subr.bf16.mxu0 0
      %804 = vmatpush1.bf16.msra.mxu0 0
      %805 = vmatprep.subr.bf16.mxu0 0
      %806 = vmatpush1.bf16.msra.mxu0 0
      %807 = vmatprep.subr.bf16.mxu0 0
      %808 = vmatpush1.bf16.msra.mxu0 0
      %809 = vmatprep.subr.bf16.mxu0 0
      %810 = vmatpush1.bf16.msra.mxu0 0
      %811 = vmatprep.subr.bf16.mxu0 0
      %812 = vmatpush1.bf16.msra.mxu0 0
      %813 = vmatprep.subr.bf16.mxu0 0
      %814 = vmatpush1.bf16.msra.mxu0 0
      %815 = vmatprep.subr.bf16.mxu0 0
      %816 = vmatpush1.bf16.msra.mxu0 0
      %817 = vmatprep.subr.bf16.mxu0 0
      %818 = vmatpush1.bf16.msra.mxu0 0
      %819 = vmatprep.subr.bf16.mxu0 0
      %820 = vmatpush1.bf16.msra.mxu0 0
      %821 = vmatprep.subr.bf16.mxu0 0
      %822 = vmatpush1.bf16.msra.mxu0 0
      %823 = vmatprep.subr.bf16.mxu0 0
      %824 = vmatpush1.bf16.msra.mxu0 0
      %825 = vmatprep.subr.bf16.mxu0 0
      %826 = vmatpush1.bf16.msra.mxu0 0
      %827 = vmatprep.mubr.bf16.mxu0 0
      %828 = vmatmul.mubr.bf16.gmra.mrb[0].mxu0 %v784
      %v829 = vpop.f32.mrb[0].mxu0
      %v830 = vadd.f32 0.0, %v829
      %v831 = vpop.f32.mrb[0].mxu0
      %v832 = vadd.f32 0.0, %v831
      %v833 = vpop.f32.mrb[0].mxu0
      %v834 = vpop.f32.mrb[0].mxu0
      %835 = vdwg.mxu0
      %836 = vmatprep.subr.bf16.mxu0 0
      %837 = vmatpush1.bf16.msra.mxu0 %v793
      %838 = vmatprep.subr.bf16.mxu0 0
      %839 = vmatpush1.bf16.msra.mxu0 0
      %840 = vmatprep.subr.bf16.mxu0 0
      %841 = vmatpush1.bf16.msra.mxu0 0
      %842 = vmatprep.subr.bf16.mxu0 0
      %843 = vmatpush1.bf16.msra.mxu0 0
      %844 = vmatprep.subr.bf16.mxu0 0
      %845 = vmatpush1.bf16.msra.mxu0 0
      %846 = vmatprep.subr.bf16.mxu0 0
      %847 = vmatpush1.bf16.msra.mxu0 0
      %848 = vmatprep.subr.bf16.mxu0 0
      %849 = vmatpush1.bf16.msra.mxu0 0
      %850 = vmatprep.subr.bf16.mxu0 0
      %851 = vmatpush1.bf16.msra.mxu0 0
      %852 = vmatprep.subr.bf16.mxu0 0
      %853 = vmatpush1.bf16.msra.mxu0 0
      %854 = vmatprep.subr.bf16.mxu0 0
      %855 = vmatpush1.bf16.msra.mxu0 0
      %856 = vmatprep.subr.bf16.mxu0 0
      %857 = vmatpush1.bf16.msra.mxu0 0
      %858 = vmatprep.subr.bf16.mxu0 0
      %859 = vmatpush1.bf16.msra.mxu0 0
      %860 = vmatprep.subr.bf16.mxu0 0
      %861 = vmatpush1.bf16.msra.mxu0 0
      %862 = vmatprep.subr.bf16.mxu0 0
      %863 = vmatpush1.bf16.msra.mxu0 0
      %864 = vmatprep.subr.bf16.mxu0 0
      %865 = vmatpush1.bf16.msra.mxu0 0
      %866 = vmatprep.subr.bf16.mxu0 0
      %867 = vmatpush1.bf16.msra.mxu0 0
      %868 = vmatprep.mubr.bf16.mxu0 0
      %869 = vmatmul.mubr.bf16.gmra.mrb[0].mxu0 %v784
      %v870 = vpop.f32.mrb[0].mxu0
      %v871 = vadd.f32 0.0, %v870
      %v872 = vpop.f32.mrb[0].mxu0
      %v873 = vpop.f32.mrb[0].mxu0
      %v874 = vpop.f32.mrb[0].mxu0
      %875 = vdwg.mxu0
      %v876 = vadd.f32 %v751, %v830
      %v877 = vadd.f32 %v752, %v832
      %v878 = vadd.f32 %v753, %v871
      %v879 = vld [vmem:[%s260] sm:$0x3f]
      %s880 = scalar_lea.vmem %s1, 20
      %v881 = vld [vmem:[%s880] sm:$0xf]
      %v883 = vcombine.high %v879, %v879
      %v885 = vunpack.c.l.s4 1983009808
      %v886 = vunpack.c.0.s8 %v885
      %v887 = vlaneseq
      %v888 = vshrl.u32 %v887, 7
      %v889 = vsub.s32 %v886, %v888
      %v890 = vrot.slane %v879, %v889
      %v892 = vunpack.c.l.s4 1983009808
      %v893 = vunpack.c.0.s8 %v892
      %v894 = vlaneseq
      %v895 = vshrl.u32 %v894, 7
      %v896 = vsub.s32 %v893, %v895
      %v897 = vrot.slane %v883, %v896
      %v898 = vcombine.high %v890, %v890
      %899 = vrot.lane.b32.xlu0 %v890, 108
      %v900 = vpop.permute.xlu0 %899
      %901 = vrot.lane.b32.xlu0 %v898, 108
      %v902 = vpop.permute.xlu0 %901
      %903 = vrot.lane.b32.xlu0 %v897, 108
      %v904 = vpop.permute.xlu0 %903
      %vm905 = vcmask 883712
      %v906 = vsel %vm905, %v900, %v902
      %v907 = vsel %vm905, %v902, %v904
      %v909 = vsel %vm316, %v881, 0
      %v912 = vsel %vm320, %v906, 0
      %v915 = vsel %vm320, %v907, 0
      %v918 = vsel %vm320, %v904, 0
      %920 = vmatprep.subr.bf16.mxu0 %v915
      %921 = vmatpush1.bf16.msra.mxu0 %v912
      %922 = vmatprep.subr.bf16.mxu0 0
      %923 = vmatpush1.bf16.msra.mxu0 0
      %924 = vmatprep.subr.bf16.mxu0 0
      %925 = vmatpush1.bf16.msra.mxu0 0
      %926 = vmatprep.subr.bf16.mxu0 0
      %927 = vmatpush1.bf16.msra.mxu0 0
      %928 = vmatprep.subr.bf16.mxu0 0
      %929 = vmatpush1.bf16.msra.mxu0 0
      %930 = vmatprep.subr.bf16.mxu0 0
      %931 = vmatpush1.bf16.msra.mxu0 0
      %932 = vmatprep.subr.bf16.mxu0 0
      %933 = vmatpush1.bf16.msra.mxu0 0
      %934 = vmatprep.subr.bf16.mxu0 0
      %935 = vmatpush1.bf16.msra.mxu0 0
      %936 = vmatprep.subr.bf16.mxu0 0
      %937 = vmatpush1.bf16.msra.mxu0 0
      %938 = vmatprep.subr.bf16.mxu0 0
      %939 = vmatpush1.bf16.msra.mxu0 0
      %940 = vmatprep.subr.bf16.mxu0 0
      %941 = vmatpush1.bf16.msra.mxu0 0
      %942 = vmatprep.subr.bf16.mxu0 0
      %943 = vmatpush1.bf16.msra.mxu0 0
      %944 = vmatprep.subr.bf16.mxu0 0
      %945 = vmatpush1.bf16.msra.mxu0 0
      %946 = vmatprep.subr.bf16.mxu0 0
      %947 = vmatpush1.bf16.msra.mxu0 0
      %948 = vmatprep.subr.bf16.mxu0 0
      %949 = vmatpush1.bf16.msra.mxu0 0
      %950 = vmatprep.subr.bf16.mxu0 0
      %951 = vmatpush1.bf16.msra.mxu0 0
      %952 = vmatprep.mubr.bf16.mxu0 0
      %953 = vmatmul.mubr.bf16.gmra.mrb[0].mxu0 %v909
      %v954 = vpop.f32.mrb[0].mxu0
      %v955 = vadd.f32 0.0, %v954
      %v956 = vpop.f32.mrb[0].mxu0
      %v957 = vadd.f32 0.0, %v956
      %v958 = vpop.f32.mrb[0].mxu0
      %v959 = vpop.f32.mrb[0].mxu0
      %960 = vdwg.mxu0
      %961 = vmatprep.subr.bf16.mxu0 0
      %962 = vmatpush1.bf16.msra.mxu0 %v918
      %963 = vmatprep.subr.bf16.mxu0 0
      %964 = vmatpush1.bf16.msra.mxu0 0
      %965 = vmatprep.subr.bf16.mxu0 0
      %966 = vmatpush1.bf16.msra.mxu0 0
      %967 = vmatprep.subr.bf16.mxu0 0
      %968 = vmatpush1.bf16.msra.mxu0 0
      %969 = vmatprep.subr.bf16.mxu0 0
      %970 = vmatpush1.bf16.msra.mxu0 0
      %971 = vmatprep.subr.bf16.mxu0 0
      %972 = vmatpush1.bf16.msra.mxu0 0
      %973 = vmatprep.subr.bf16.mxu0 0
      %974 = vmatpush1.bf16.msra.mxu0 0
      %975 = vmatprep.subr.bf16.mxu0 0
      %976 = vmatpush1.bf16.msra.mxu0 0
      %977 = vmatprep.subr.bf16.mxu0 0
      %978 = vmatpush1.bf16.msra.mxu0 0
      %979 = vmatprep.subr.bf16.mxu0 0
      %980 = vmatpush1.bf16.msra.mxu0 0
      %981 = vmatprep.subr.bf16.mxu0 0
      %982 = vmatpush1.bf16.msra.mxu0 0
      %983 = vmatprep.subr.bf16.mxu0 0
      %984 = vmatpush1.bf16.msra.mxu0 0
      %985 = vmatprep.subr.bf16.mxu0 0
      %986 = vmatpush1.bf16.msra.mxu0 0
      %987 = vmatprep.subr.bf16.mxu0 0
      %988 = vmatpush1.bf16.msra.mxu0 0
      %989 = vmatprep.subr.bf16.mxu0 0
      %990 = vmatpush1.bf16.msra.mxu0 0
      %991 = vmatprep.subr.bf16.mxu0 0
      %992 = vmatpush1.bf16.msra.mxu0 0
      %993 = vmatprep.mubr.bf16.mxu0 0
      %994 = vmatmul.mubr.bf16.gmra.mrb[0].mxu0 %v909
      %v995 = vpop.f32.mrb[0].mxu0
      %v996 = vadd.f32 0.0, %v995
      %v997 = vpop.f32.mrb[0].mxu0
      %v998 = vpop.f32.mrb[0].mxu0
      %v999 = vpop.f32.mrb[0].mxu0
      %1000 = vdwg.mxu0
      %v1001 = vadd.f32 %v876, %v955
      %v1002 = vadd.f32 %v877, %v957
      %v1003 = vadd.f32 %v878, %v996
      %v1004 = vld [vmem:[%s260] sm:$0x3f]
      %s1005 = scalar_lea.vmem %s1, 24
      %v1006 = vld [vmem:[%s1005] sm:$0xf]
      %v1008 = vcombine.high %v1004, %v1004
      %v1010 = vunpack.c.l.s4 1983009808
      %v1011 = vunpack.c.0.s8 %v1010
      %v1012 = vlaneseq
      %v1013 = vshrl.u32 %v1012, 7
      %v1014 = vsub.s32 %v1011, %v1013
      %v1015 = vrot.slane %v1004, %v1014
      %v1017 = vunpack.c.l.s4 1983009808
      %v1018 = vunpack.c.0.s8 %v1017
      %v1019 = vlaneseq
      %v1020 = vshrl.u32 %v1019, 7
      %v1021 = vsub.s32 %v1018, %v1020
      %v1022 = vrot.slane %v1008, %v1021
      %v1023 = vcombine.high %v1015, %v1015
      %1024 = vrot.lane.b32.xlu0 %v1015, 92
      %v1025 = vpop.permute.xlu0 %1024
      %1026 = vrot.lane.b32.xlu0 %v1023, 92
      %v1027 = vpop.permute.xlu0 %1026
      %1028 = vrot.lane.b32.xlu0 %v1022, 92
      %v1029 = vpop.permute.xlu0 %1028
      %vm1030 = vcmask 752640
      %v1031 = vsel %vm1030, %v1025, %v1027
      %v1032 = vsel %vm1030, %v1027, %v1029
      %v1034 = vsel %vm316, %v1006, 0
      %v1037 = vsel %vm320, %v1031, 0
      %v1040 = vsel %vm320, %v1032, 0
      %v1043 = vsel %vm320, %v1029, 0
      %1045 = vmatprep.subr.bf16.mxu0 %v1040
      %1046 = vmatpush1.bf16.msra.mxu0 %v1037
      %1047 = vmatprep.subr.bf16.mxu0 0
      %1048 = vmatpush1.bf16.msra.mxu0 0
      %1049 = vmatprep.subr.bf16.mxu0 0
      %1050 = vmatpush1.bf16.msra.mxu0 0
      %1051 = vmatprep.subr.bf16.mxu0 0
      %1052 = vmatpush1.bf16.msra.mxu0 0
      %1053 = vmatprep.subr.bf16.mxu0 0
      %1054 = vmatpush1.bf16.msra.mxu0 0
      %1055 = vmatprep.subr.bf16.mxu0 0
      %1056 = vmatpush1.bf16.msra.mxu0 0
      %1057 = vmatprep.subr.bf16.mxu0 0
      %1058 = vmatpush1.bf16.msra.mxu0 0
      %1059 = vmatprep.subr.bf16.mxu0 0
      %1060 = vmatpush1.bf16.msra.mxu0 0
      %1061 = vmatprep.subr.bf16.mxu0 0
      %1062 = vmatpush1.bf16.msra.mxu0 0
      %1063 = vmatprep.subr.bf16.mxu0 0
      %1064 = vmatpush1.bf16.msra.mxu0 0
      %1065 = vmatprep.subr.bf16.mxu0 0
      %1066 = vmatpush1.bf16.msra.mxu0 0
      %1067 = vmatprep.subr.bf16.mxu0 0
      %1068 = vmatpush1.bf16.msra.mxu0 0
      %1069 = vmatprep.subr.bf16.mxu0 0
      %1070 = vmatpush1.bf16.msra.mxu0 0
      %1071 = vmatprep.subr.bf16.mxu0 0
      %1072 = vmatpush1.bf16.msra.mxu0 0
      %1073 = vmatprep.subr.bf16.mxu0 0
      %1074 = vmatpush1.bf16.msra.mxu0 0
      %1075 = vmatprep.subr.bf16.mxu0 0
      %1076 = vmatpush1.bf16.msra.mxu0 0
      %1077 = vmatprep.mubr.bf16.mxu0 0
      %1078 = vmatmul.mubr.bf16.gmra.mrb[0].mxu0 %v1034
      %v1079 = vpop.f32.mrb[0].mxu0
      %v1080 = vadd.f32 0.0, %v1079
      %v1081 = vpop.f32.mrb[0].mxu0
      %v1082 = vadd.f32 0.0, %v1081
      %v1083 = vpop.f32.mrb[0].mxu0
      %v1084 = vpop.f32.mrb[0].mxu0
      %1085 = vdwg.mxu0
      %1086 = vmatprep.subr.bf16.mxu0 0
      %1087 = vmatpush1.bf16.msra.mxu0 %v1043
      %1088 = vmatprep.subr.bf16.mxu0 0
      %1089 = vmatpush1.bf16.msra.mxu0 0
      %1090 = vmatprep.subr.bf16.mxu0 0
      %1091 = vmatpush1.bf16.msra.mxu0 0
      %1092 = vmatprep.subr.bf16.mxu0 0
      %1093 = vmatpush1.bf16.msra.mxu0 0
      %1094 = vmatprep.subr.bf16.mxu0 0
      %1095 = vmatpush1.bf16.msra.mxu0 0
      %1096 = vmatprep.subr.bf16.mxu0 0
      %1097 = vmatpush1.bf16.msra.mxu0 0
      %1098 = vmatprep.subr.bf16.mxu0 0
      %1099 = vmatpush1.bf16.msra.mxu0 0
      %1100 = vmatprep.subr.bf16.mxu0 0
      %1101 = vmatpush1.bf16.msra.mxu0 0
      %1102 = vmatprep.subr.bf16.mxu0 0
      %1103 = vmatpush1.bf16.msra.mxu0 0
      %1104 = vmatprep.subr.bf16.mxu0 0
      %1105 = vmatpush1.bf16.msra.mxu0 0
      %1106 = vmatprep.subr.bf16.mxu0 0
      %1107 = vmatpush1.bf16.msra.mxu0 0
      %1108 = vmatprep.subr.bf16.mxu0 0
      %1109 = vmatpush1.bf16.msra.mxu0 0
      %1110 = vmatprep.subr.bf16.mxu0 0
      %1111 = vmatpush1.bf16.msra.mxu0 0
      %1112 = vmatprep.subr.bf16.mxu0 0
      %1113 = vmatpush1.bf16.msra.mxu0 0
      %1114 = vmatprep.subr.bf16.mxu0 0
      %1115 = vmatpush1.bf16.msra.mxu0 0
      %1116 = vmatprep.subr.bf16.mxu0 0
      %1117 = vmatpush1.bf16.msra.mxu0 0
      %1118 = vmatprep.mubr.bf16.mxu0 0
      %1119 = vmatmul.mubr.bf16.gmra.mrb[0].mxu0 %v1034
      %v1120 = vpop.f32.mrb[0].mxu0
      %v1121 = vadd.f32 0.0, %v1120
      %v1122 = vpop.f32.mrb[0].mxu0
      %v1123 = vpop.f32.mrb[0].mxu0
      %v1124 = vpop.f32.mrb[0].mxu0
      %1125 = vdwg.mxu0
      %v1126 = vadd.f32 %v1001, %v1080
      %v1127 = vadd.f32 %v1002, %v1082
      %v1128 = vadd.f32 %v1003, %v1121
      %v1129 = vld [vmem:[%s260] sm:$0x3f]
      %s1130 = scalar_lea.vmem %s1, 28
      %v1131 = vld [vmem:[%s1130] sm:$0xf]
      %v1133 = vcombine.high %v1129, %v1129
      %v1135 = vunpack.c.l.s4 1983009808
      %v1136 = vunpack.c.0.s8 %v1135
      %v1137 = vlaneseq
      %v1138 = vshrl.u32 %v1137, 7
      %v1139 = vsub.s32 %v1136, %v1138
      %v1140 = vrot.slane %v1129, %v1139
      %v1142 = vunpack.c.l.s4 1983009808
      %v1143 = vunpack.c.0.s8 %v1142
      %v1144 = vlaneseq
      %v1145 = vshrl.u32 %v1144, 7
      %v1146 = vsub.s32 %v1143, %v1145
      %v1147 = vrot.slane %v1133, %v1146
      %v1148 = vcombine.high %v1140, %v1140
      %1149 = vrot.lane.b32.xlu0 %v1140, 91
      %v1150 = vpop.permute.xlu0 %1149
      %1151 = vrot.lane.b32.xlu0 %v1148, 91
      %v1152 = vpop.permute.xlu0 %1151
      %1153 = vrot.lane.b32.xlu0 %v1147, 91
      %v1154 = vpop.permute.xlu0 %1153
      %vm1155 = vcmask 744448
      %v1156 = vsel %vm1155, %v1150, %v1152
      %v1157 = vsel %vm1155, %v1152, %v1154
      %v1159 = vsel %vm316, %v1131, 0
      %v1162 = vsel %vm320, %v1156, 0
      %v1165 = vsel %vm320, %v1157, 0
      %v1168 = vsel %vm320, %v1154, 0
      %1170 = vmatprep.subr.bf16.mxu0 %v1165
      %1171 = vmatpush1.bf16.msra.mxu0 %v1162
      %1172 = vmatprep.subr.bf16.mxu0 0
      %1173 = vmatpush1.bf16.msra.mxu0 0
      %1174 = vmatprep.subr.bf16.mxu0 0
      %1175 = vmatpush1.bf16.msra.mxu0 0
      %1176 = vmatprep.subr.bf16.mxu0 0
      %1177 = vmatpush1.bf16.msra.mxu0 0
      %1178 = vmatprep.subr.bf16.mxu0 0
      %1179 = vmatpush1.bf16.msra.mxu0 0
      %1180 = vmatprep.subr.bf16.mxu0 0
      %1181 = vmatpush1.bf16.msra.mxu0 0
      %1182 = vmatprep.subr.bf16.mxu0 0
      %1183 = vmatpush1.bf16.msra.mxu0 0
      %1184 = vmatprep.subr.bf16.mxu0 0
      %1185 = vmatpush1.bf16.msra.mxu0 0
      %1186 = vmatprep.subr.bf16.mxu0 0
      %1187 = vmatpush1.bf16.msra.mxu0 0
      %1188 = vmatprep.subr.bf16.mxu0 0
      %1189 = vmatpush1.bf16.msra.mxu0 0
      %1190 = vmatprep.subr.bf16.mxu0 0
      %1191 = vmatpush1.bf16.msra.mxu0 0
      %1192 = vmatprep.subr.bf16.mxu0 0
      %1193 = vmatpush1.bf16.msra.mxu0 0
      %1194 = vmatprep.subr.bf16.mxu0 0
      %1195 = vmatpush1.bf16.msra.mxu0 0
      %1196 = vmatprep.subr.bf16.mxu0 0
      %1197 = vmatpush1.bf16.msra.mxu0 0
      %1198 = vmatprep.subr.bf16.mxu0 0
      %1199 = vmatpush1.bf16.msra.mxu0 0
      %1200 = vmatprep.subr.bf16.mxu0 0
      %1201 = vmatpush1.bf16.msra.mxu0 0
      %1202 = vmatprep.mubr.bf16.mxu0 0
      %1203 = vmatmul.mubr.bf16.gmra.mrb[0].mxu0 %v1159
      %v1204 = vpop.f32.mrb[0].mxu0
      %v1205 = vadd.f32 0.0, %v1204
      %v1206 = vpop.f32.mrb[0].mxu0
      %v1207 = vadd.f32 0.0, %v1206
      %v1208 = vpop.f32.mrb[0].mxu0
      %v1209 = vpop.f32.mrb[0].mxu0
      %1210 = vdwg.mxu0
      %1211 = vmatprep.subr.bf16.mxu0 0
      %1212 = vmatpush1.bf16.msra.mxu0 %v1168
      %1213 = vmatprep.subr.bf16.mxu0 0
      %1214 = vmatpush1.bf16.msra.mxu0 0
      %1215 = vmatprep.subr.bf16.mxu0 0
      %1216 = vmatpush1.bf16.msra.mxu0 0
      %1217 = vmatprep.subr.bf16.mxu0 0
      %1218 = vmatpush1.bf16.msra.mxu0 0
      %1219 = vmatprep.subr.bf16.mxu0 0
      %1220 = vmatpush1.bf16.msra.mxu0 0
      %1221 = vmatprep.subr.bf16.mxu0 0
      %1222 = vmatpush1.bf16.msra.mxu0 0
      %1223 = vmatprep.subr.bf16.mxu0 0
      %1224 = vmatpush1.bf16.msra.mxu0 0
      %1225 = vmatprep.subr.bf16.mxu0 0
      %1226 = vmatpush1.bf16.msra.mxu0 0
      %1227 = vmatprep.subr.bf16.mxu0 0
      %1228 = vmatpush1.bf16.msra.mxu0 0
      %1229 = vmatprep.subr.bf16.mxu0 0
      %1230 = vmatpush1.bf16.msra.mxu0 0
      %1231 = vmatprep.subr.bf16.mxu0 0
      %1232 = vmatpush1.bf16.msra.mxu0 0
      %1233 = vmatprep.subr.bf16.mxu0 0
      %1234 = vmatpush1.bf16.msra.mxu0 0
      %1235 = vmatprep.subr.bf16.mxu0 0
      %1236 = vmatpush1.bf16.msra.mxu0 0
      %1237 = vmatprep.subr.bf16.mxu0 0
      %1238 = vmatpush1.bf16.msra.mxu0 0
      %1239 = vmatprep.subr.bf16.mxu0 0
      %1240 = vmatpush1.bf16.msra.mxu0 0
      %1241 = vmatprep.subr.bf16.mxu0 0
      %1242 = vmatpush1.bf16.msra.mxu0 0
      %1243 = vmatprep.mubr.bf16.mxu0 0
      %1244 = vmatmul.mubr.bf16.gmra.mrb[0].mxu0 %v1159
      %v1245 = vpop.f32.mrb[0].mxu0
      %v1246 = vadd.f32 0.0, %v1245
      %v1247 = vpop.f32.mrb[0].mxu0
      %v1248 = vpop.f32.mrb[0].mxu0
      %v1249 = vpop.f32.mrb[0].mxu0
      %1250 = vdwg.mxu0
      %v1251 = vadd.f32 %v1126, %v1205
      %v1252 = vadd.f32 %v1127, %v1207
      %v1253 = vadd.f32 %v1128, %v1246
      %v1254 = vld [vmem:[%s260] sm:$0x3f]
      %s1255 = scalar_lea.vmem %s1, 32
      %v1256 = vld [vmem:[%s1255] sm:$0xf]
      %v1258 = vcombine.high %v1254, %v1254
      %v1260 = vunpack.c.l.s4 1983009808
      %v1261 = vunpack.c.0.s8 %v1260
      %v1262 = vlaneseq
      %v1263 = vshrl.u32 %v1262, 7
      %v1264 = vsub.s32 %v1261, %v1263
      %v1265 = vrot.slane %v1254, %v1264
      %v1267 = vunpack.c.l.s4 1983009808
      %v1268 = vunpack.c.0.s8 %v1267
      %v1269 = vlaneseq
      %v1270 = vshrl.u32 %v1269, 7
      %v1271 = vsub.s32 %v1268, %v1270
      %v1272 = vrot.slane %v1258, %v1271
      %v1273 = vcombine.high %v1265, %v1265
      %1274 = vrot.lane.b32.xlu0 %v1265, 90
      %v1275 = vpop.permute.xlu0 %1274
      %1276 = vrot.lane.b32.xlu0 %v1273, 90
      %v1277 = vpop.permute.xlu0 %1276
      %1278 = vrot.lane.b32.xlu0 %v1272, 90
      %v1279 = vpop.permute.xlu0 %1278
      %vm1280 = vcmask 736256
      %v1281 = vsel %vm1280, %v1275, %v1277
      %v1282 = vsel %vm1280, %v1277, %v1279
      %v1284 = vsel %vm316, %v1256, 0
      %v1287 = vsel %vm320, %v1281, 0
      %v1290 = vsel %vm320, %v1282, 0
      %v1293 = vsel %vm320, %v1279, 0
      %1295 = vmatprep.subr.bf16.mxu0 %v1290
      %1296 = vmatpush1.bf16.msra.mxu0 %v1287
      %1297 = vmatprep.subr.bf16.mxu0 0
      %1298 = vmatpush1.bf16.msra.mxu0 0
      %1299 = vmatprep.subr.bf16.mxu0 0
      %1300 = vmatpush1.bf16.msra.mxu0 0
      %1301 = vmatprep.subr.bf16.mxu0 0
      %1302 = vmatpush1.bf16.msra.mxu0 0
      %1303 = vmatprep.subr.bf16.mxu0 0
      %1304 = vmatpush1.bf16.msra.mxu0 0
      %1305 = vmatprep.subr.bf16.mxu0 0
      %1306 = vmatpush1.bf16.msra.mxu0 0
      %1307 = vmatprep.subr.bf16.mxu0 0
      %1308 = vmatpush1.bf16.msra.mxu0 0
      %1309 = vmatprep.subr.bf16.mxu0 0
      %1310 = vmatpush1.bf16.msra.mxu0 0
      %1311 = vmatprep.subr.bf16.mxu0 0
      %1312 = vmatpush1.bf16.msra.mxu0 0
      %1313 = vmatprep.subr.bf16.mxu0 0
      %1314 = vmatpush1.bf16.msra.mxu0 0
      %1315 = vmatprep.subr.bf16.mxu0 0
      %1316 = vmatpush1.bf16.msra.mxu0 0
      %1317 = vmatprep.subr.bf16.mxu0 0
      %1318 = vmatpush1.bf16.msra.mxu0 0
      %1319 = vmatprep.subr.bf16.mxu0 0
      %1320 = vmatpush1.bf16.msra.mxu0 0
      %1321 = vmatprep.subr.bf16.mxu0 0
      %1322 = vmatpush1.bf16.msra.mxu0 0
      %1323 = vmatprep.subr.bf16.mxu0 0
      %1324 = vmatpush1.bf16.msra.mxu0 0
      %1325 = vmatprep.subr.bf16.mxu0 0
      %1326 = vmatpush1.bf16.msra.mxu0 0
      %1327 = vmatprep.mubr.bf16.mxu0 0
      %1328 = vmatmul.mubr.bf16.gmra.mrb[0].mxu0 %v1284
      %v1329 = vpop.f32.mrb[0].mxu0
      %v1330 = vadd.f32 0.0, %v1329
      %v1331 = vpop.f32.mrb[0].mxu0
      %v1332 = vadd.f32 0.0, %v1331
      %v1333 = vpop.f32.mrb[0].mxu0
      %v1334 = vpop.f32.mrb[0].mxu0
      %1335 = vdwg.mxu0
      %1336 = vmatprep.subr.bf16.mxu0 0
      %1337 = vmatpush1.bf16.msra.mxu0 %v1293
      %1338 = vmatprep.subr.bf16.mxu0 0
      %1339 = vmatpush1.bf16.msra.mxu0 0
      %1340 = vmatprep.subr.bf16.mxu0 0
      %1341 = vmatpush1.bf16.msra.mxu0 0
      %1342 = vmatprep.subr.bf16.mxu0 0
      %1343 = vmatpush1.bf16.msra.mxu0 0
      %1344 = vmatprep.subr.bf16.mxu0 0
      %1345 = vmatpush1.bf16.msra.mxu0 0
      %1346 = vmatprep.subr.bf16.mxu0 0
      %1347 = vmatpush1.bf16.msra.mxu0 0
      %1348 = vmatprep.subr.bf16.mxu0 0
      %1349 = vmatpush1.bf16.msra.mxu0 0
      %1350 = vmatprep.subr.bf16.mxu0 0
      %1351 = vmatpush1.bf16.msra.mxu0 0
      %1352 = vmatprep.subr.bf16.mxu0 0
      %1353 = vmatpush1.bf16.msra.mxu0 0
      %1354 = vmatprep.subr.bf16.mxu0 0
      %1355 = vmatpush1.bf16.msra.mxu0 0
      %1356 = vmatprep.subr.bf16.mxu0 0
      %1357 = vmatpush1.bf16.msra.mxu0 0
      %1358 = vmatprep.subr.bf16.mxu0 0
      %1359 = vmatpush1.bf16.msra.mxu0 0
      %1360 = vmatprep.subr.bf16.mxu0 0
      %1361 = vmatpush1.bf16.msra.mxu0 0
      %1362 = vmatprep.subr.bf16.mxu0 0
      %1363 = vmatpush1.bf16.msra.mxu0 0
      %1364 = vmatprep.subr.bf16.mxu0 0
      %1365 = vmatpush1.bf16.msra.mxu0 0
      %1366 = vmatprep.subr.bf16.mxu0 0
      %1367 = vmatpush1.bf16.msra.mxu0 0
      %1368 = vmatprep.mubr.bf16.mxu0 0
      %1369 = vmatmul.mubr.bf16.gmra.mrb[0].mxu0 %v1284
      %v1370 = vpop.f32.mrb[0].mxu0
      %v1371 = vadd.f32 0.0, %v1370
      %v1372 = vpop.f32.mrb[0].mxu0
      %v1373 = vpop.f32.mrb[0].mxu0
      %v1374 = vpop.f32.mrb[0].mxu0
      %1375 = vdwg.mxu0
      %v1376 = vadd.f32 %v1251, %v1330
      %v1377 = vadd.f32 %v1252, %v1332
      %v1378 = vadd.f32 %v1253, %v1371
      %v1379 = vpack.c.bf16 %v1376, %v1376
      %v1380 = vpack.c.bf16 %v1377, %v1377
      %v1381 = vpack.c.bf16 %v1378, %v1378
      %v1385 = vunpack.c.l.b16 %v1379
      %v1386 = vunpack.c.l.b16 %v1380
      %v1387 = vunpack.c.l.b16 %v1381
      %v1388 = vpack.c.b16 %v1386, %v1385
      %v1389 = vpack.c.b16 %v1387, %v1387
      %1392 = vst [vmem:[%s269] sm:$0xff] %v1388
      %vm1393 = vcmask 257024
      %1394 = vst.msk [vmem:[%s269 + $0x8] sm:$0xf] %vm1393, %v1389
      %v1395 = vld [vmem:[%s2] sm:$0x7]
      %v1397 = vlaneseq
      %v1398 = vshrl.u32 %v1397, 7
      %v1399 = vsub.s32 0, %v1398
      %v1400 = vrot.slane %v1395, %v1399
      %v1401 = vlaneseq
      %v1402 = vshrl.u32 %v1401, 7
      %v1403 = vsub.s32 1, %v1402
      %v1404 = vrot.slane %v1395, %v1403
      %v1405 = vlaneseq
      %v1406 = vshrl.u32 %v1405, 7
      %v1407 = vsub.s32 2, %v1406
      %v1408 = vrot.slane %v1395, %v1407
      %v1412 = vmul.f32 %v1376, %v1400
      %v1413 = vmul.f32 %v1377, %v1404
      %v1414 = vmul.f32 %v1378, %v1408
      %v1415 = vadd.f32 %v1412, %v1413
      %vm1416 = vcmask 261120
      %v1417 = vsel %vm1416, %v1414, 0.0
      %v1418 = vadd.f32 %v1415, %v1417
      %1419 = vadd.xlane.f32.xlu0 %v1418
      %v1420 = vpop.xlane.xlu0 %1419
      %vm1421 = vcmask 7168
      %1422 = vst.msk [vmem:[%s277] sm:$0xff] %vm1421, %v1420
      %v1423 = vmul.f32 %v1376, %v1412
      %v1424 = vmul.f32 %v1377, %v1413
      %v1425 = vmul.f32 %v1378, %v1414
      %v1426 = vadd.f32 %v1423, %v1424
      %v1427 = vsel %vm1416, %v1425, 0.0
      %v1428 = vadd.f32 %v1426, %v1427
      %1429 = vadd.xlane.f32.xlu0 %v1428
      %v1430 = vpop.xlane.xlu0 %1429
      %1431 = vst.msk [vmem:[%s284] sm:$0xff] %vm1421, %v1430
      %s1432 = smul.u32 3, %s22
      %p1433 = scmp.lt.s32.totalorder %s21, 1
      %s1434 = scalar_select %p1433, %s21, 1
      %p1435 = scmp.lt.s32.totalorder %s1432, 2
      %s1436 = scalar_select %p1435, %s1432, 2
      %s1437 = smul.addr %s1434, 3
      %s1438 = sadd.s32 %s1436, %s1437
      %s1439 = smul.addr %s1438, 4
      %s1440 = scalar_lea.vmem %s3, %s1439
      %p1441 = scmp.lt.s32.totalorder %s21, 1
      %s1442 = scalar_select %p1441, %s21, 1
      %p1443 = scmp.lt.s32.totalorder %s22, 0
      %s1444 = scalar_select %p1443, %s22, 0
      %s1445 = sadd.s32 %s1444, %s1442
      %s1446 = smul.addr %s1445, 8
      %s1447 = scalar_lea.vmem %s4, %s1446
      %p1448 = scmp.lt.s32.totalorder %s21, 1
      %s1449 = scalar_select %p1448, %s21, 1
      %p1450 = scmp.lt.s32.totalorder %s22, 0
      %s1451 = scalar_select %p1450, %s22, 0
      %s1452 = sadd.s32 %s1451, %s1449
      %s1453 = smul.addr %s1452, 8
      %s1454 = scalar_lea.vmem %s5, %s1453
      // Predicated region
      $region33: #{conv2d_batchnorm_relu.2} parent=31 // pred_check
        %p1455 = pneg %p117
      $region34: #{conv2d_batchnorm_relu.2} parent=31 // pred_check_branch
        %1457 = sbr.rel (%p1455) target = $region36
      $region35: #{conv2d_batchnorm_relu.2} parent=31 // pred_region
        %s1458 = smul.u32 3, %s22
      $region36: #{conv2d_batchnorm_relu.2} parent=31 // pred_fallthru
        _
      // Predicated region
      $region37: #{conv2d_batchnorm_relu.2} parent=31 // pred_check
        %p1459 = pneg %p145
      $region38: #{conv2d_batchnorm_relu.2} parent=31 // pred_check_branch
        %1461 = sbr.rel (%p1459) target = $region40
      $region39: #{conv2d_batchnorm_relu.2} parent=31 // pred_region
        _
      $region40: #{conv2d_batchnorm_relu.2} parent=31 // pred_fallthru
        _
      // Predicated region
      $region41: #{conv2d_batchnorm_relu.2} parent=31 // pred_check
        %p1462 = pneg %p173
      $region42: #{conv2d_batchnorm_relu.2} parent=31 // pred_check_branch
        %1464 = sbr.rel (%p1462) target = $region44
      $region43: #{conv2d_batchnorm_relu.2} parent=31 // pred_region
        _
      $region44: #{conv2d_batchnorm_relu.2} parent=31 // pred_fallthru
        _
    $region32: #{conv2d_batchnorm_relu.2} parent=5 // pred_fallthru
      _
    %p1465 = scmp.le.s32.totalorder 2, %s12
    // Predicated region
    $region45: #{conv2d_batchnorm_relu.2} parent=5 // pred_check
      %p1466 = pneg %p1465
    $region46: #{conv2d_batchnorm_relu.2} parent=5 // pred_check_branch
      %1468 = sbr.rel (%p1466) target = $region48
    $region47: #{conv2d_batchnorm_relu.2} parent=5 // pred_region
      %s1469 = ssub.s32 %s12, 2
      // Predicated region
      $region49: #{conv2d_batchnorm_relu.2} parent=47 // pred_check
        %p1470 = pneg %p123
      $region50: #{conv2d_batchnorm_relu.2} parent=47 // pred_check_branch
        %1472 = sbr.rel (%p1470) target = $region52
      $region51: #{conv2d_batchnorm_relu.2} parent=47 // pred_region
        %s1473 = smul.u32 3, %s24
        %p1474 = scmp.lt.s32.totalorder %s23, 1
        %s1475 = scalar_select %p1474, %s23, 1
        %p1476 = scmp.lt.s32.totalorder %s1473, 2
        %s1477 = scalar_select %p1476, %s1473, 2
        %s1478 = smul.addr %s1475, 3
        %s1479 = sadd.s32 %s1477, %s1478
        %s1480 = smul.addr %s1479, 4
        %s1481 = scalar_lea.vmem %s3, %s1480
      $region52: #{conv2d_batchnorm_relu.2} parent=47 // pred_fallthru
        _
      // Predicated region
      $region53: #{conv2d_batchnorm_relu.2} parent=47 // pred_check
        %p1482 = pneg %p151
      $region54: #{conv2d_batchnorm_relu.2} parent=47 // pred_check_branch
        %1484 = sbr.rel (%p1482) target = $region56
      $region55: #{conv2d_batchnorm_relu.2} parent=47 // pred_region
        %p1485 = scmp.lt.s32.totalorder %s23, 1
        %s1486 = scalar_select %p1485, %s23, 1
        %p1487 = scmp.lt.s32.totalorder %s24, 0
        %s1488 = scalar_select %p1487, %s24, 0
        %s1489 = sadd.s32 %s1488, %s1486
        %s1490 = smul.addr %s1489, 8
        %s1491 = scalar_lea.vmem %s4, %s1490
      $region56: #{conv2d_batchnorm_relu.2} parent=47 // pred_fallthru
        _
      // Predicated region
      $region57: #{conv2d_batchnorm_relu.2} parent=47 // pred_check
        %p1492 = pneg %p179
      $region58: #{conv2d_batchnorm_relu.2} parent=47 // pred_check_branch
        %1494 = sbr.rel (%p1492) target = $region60
      $region59: #{conv2d_batchnorm_relu.2} parent=47 // pred_region
        %p1495 = scmp.lt.s32.totalorder %s23, 1
        %s1496 = scalar_select %p1495, %s23, 1
        %p1497 = scmp.lt.s32.totalorder %s24, 0
        %s1498 = scalar_select %p1497, %s24, 0
        %s1499 = sadd.s32 %s1498, %s1496
        %s1500 = smul.addr %s1499, 8
        %s1501 = scalar_lea.vmem %s5, %s1500
      $region60: #{conv2d_batchnorm_relu.2} parent=47 // pred_fallthru
        _
    $region48: #{conv2d_batchnorm_relu.2} parent=5 // pred_fallthru
      _
  $region6: #{conv2d_batchnorm_relu.2} parent=0 // loop_footer
    %s16 = sadd.s32 1, %s12
  $region7: #{conv2d_batchnorm_relu.2} parent=0 // loop_footer_branch
    %11 = sbr.rel target = $region3
  $region8: #{conv2d_batchnorm_relu.2} parent=0 // loop_exit
    _

</llo_original>
